<compile_context>
chip_gen: v6e
topology: v6e:2x2x1
jax: 0.10.0
libtpu: 0.0.40
codegen_flags: <defaults>
</compile_context>

<pallas_src>
import jax
import jax.numpy as jnp
from jax.experimental import pallas as pl
from jax.experimental.pallas import tpu as pltpu


# ------------------------------ layout helpers -------------------------------

def _round_up(v, m):
    return (v + m - 1) // m * m


def _layout(dims):
    """Sample-band layout: each MC sample occupies a contiguous band of `band`
    lanes; G samples share one lane-dense DP-wide tile."""
    band = max(dims)
    if band <= 128:
        G = 128 // band
        DP = 128
    else:
        G = 1
        DP = _round_up(band, 128)
    return band, G, DP


def _blockdiag(mat, G, band, DP):
    """Place (r, c) mat at G diagonal band positions of a zero (DP, DP) tile."""
    r, c = mat.shape
    out = jnp.zeros((DP, DP), jnp.float32)
    for g in range(G):
        out = out.at[g * band:g * band + r, g * band:g * band + c].set(mat)
    return out


def _bandbcast(vec, G, band, DP):
    """Place (d,) vec into each sample band of a zero (1, DP) row."""
    d = vec.shape[0]
    out = jnp.zeros((1, DP), jnp.float32)
    for g in range(G):
        out = out.at[0, g * band:g * band + d].set(vec)
    return out


# ------------------------------ parameter packing -----------------------------

def pack_params(params, d_in, use_bf16=False):
    """Pack BayesLinear mu/sigma once (reused across forward calls).

    params: list (per layer) of dicts: w_mu (D_out, D_in), w_log_sigma,
            b_mu (1, D_out), b_log_sigma.
    """
    L = len(params)
    dims = [int(d_in)] + [int(p["w_mu"].shape[0]) for p in params]
    band, G, DP = _layout(dims)
    wdt = jnp.bfloat16 if use_bf16 else jnp.float32

    w_mu = jnp.stack([_blockdiag(jnp.asarray(p["w_mu"], jnp.float32).T, G, band, DP)
                      for p in params]).astype(wdt)                         # (L, DP, DP)
    w_sig = jnp.stack([_blockdiag(jnp.exp(jnp.asarray(p["w_log_sigma"], jnp.float32)).T,
                                  G, band, DP) for p in params]).astype(wdt)  # (L, DP, DP)
    # biases are tiny: keep them f32 regardless of use_bf16
    b_mu = jnp.stack([_bandbcast(jnp.asarray(p["b_mu"], jnp.float32).reshape(-1),
                                 G, band, DP) for p in params])             # (L, 1, DP)
    b_sig = jnp.stack([_bandbcast(jnp.exp(jnp.asarray(p["b_log_sigma"],
                                                      jnp.float32)).reshape(-1),
                                  G, band, DP) for p in params])            # (L, 1, DP)

    return dict(w_mu=w_mu, w_sig=w_sig, b_mu=b_mu, b_sig=b_sig,
                dims=dims, band=band, G=G, DP=DP, n_layers=L, use_bf16=use_bf16)


def pack_eps(eps_samples, packed, n_groups_padded):
    """Pack per-sample N(0,1) noise into block-diagonal group tiles."""
    dims, band, G, DP, L = (packed["dims"], packed["band"], packed["G"],
                            packed["DP"], packed["n_layers"])
    wdt = jnp.bfloat16 if packed["use_bf16"] else jnp.float32
    w_eps = jnp.zeros((n_groups_padded, L, DP, DP), jnp.float32)
    b_eps = jnp.zeros((n_groups_padded, L, 1, DP), jnp.float32)
    for s, es in enumerate(eps_samples):
        n, g = divmod(s, G)
        o = g * band
        for l, e in enumerate(es):
            din, dout = dims[l], dims[l + 1]
            w_eps = w_eps.at[n, l, o:o + din, o:o + dout].set(
                jnp.asarray(e["w_eps"], jnp.float32).T)
            b_eps = b_eps.at[n, l, 0, o:o + dout].set(
                jnp.asarray(e["b_eps"], jnp.float32).reshape(-1))
    return w_eps.astype(wdt), b_eps   # bias eps stays f32


# ---------------------------------- kernel ------------------------------------

def _make_bnn_kernel(n_layers, chunk, st, use_bf16):
    def kernel(x_ref, wmu_ref, wsig_ref, bmu_ref, bsig_ref,
               weps_ref, beps_ref, out_ref):
        x = x_ref[...]                                          # (BP, DP) f32
        for c in range(chunk):                                  # sample groups this step
            h = x
            for l in range(n_layers):
                # Bayesian reparameterization; sigma precomputed on host.
                # When use_bf16, mu/sigma/eps are already bf16 (bf16 VALUs on v6e/v7x).
                w = wmu_ref[l] + wsig_ref[l] * weps_ref[c, l]   # (DP, DP), block-diag
                b = bmu_ref[l] + bsig_ref[l] * beps_ref[c, l]   # (1, DP) f32
                lhs = h.astype(jnp.bfloat16) if use_bf16 else h
                # weights pre-transposed to (D_in, D_out): plain h @ w, f32 accumulate
                h = jax.lax.dot_general(
                    lhs, w, (((1,), (0,)), ((), ())),
                    preferred_element_type=jnp.float32) + b     # (BP, DP) f32
                if l < n_layers - 1:
                    h = jnp.tanh(h)
            if st:
                h = jax.nn.softplus(h) + 1e-6
            out_ref[c] = h.astype(out_ref.dtype)
    return kernel


# --------------------------------- wrappers -----------------------------------

def bnn_forward_mc(x, params, eps_samples, st=False, use_bf16=False,
                   groups_per_step=4, packed=None):
    """Run S Monte-Carlo BNNNet forward passes in ONE pallas_call.

    x:            (B, D_in) float32
    params:       list (per layer) of dicts: w_mu, w_log_sigma, b_mu, b_log_sigma
    eps_samples:  list of S samples; each a list (per layer) of dicts w_eps, b_eps
    packed:       optional result of pack_params (reuse across calls)
    returns:      (S, B, D_out) float32
    """
    if packed is None:
        packed = pack_params(params, x.shape[1], use_bf16=use_bf16)
    dims, band, G, DP, L = (packed["dims"], packed["band"], packed["G"],
                            packed["DP"], packed["n_layers"])
    use_bf16 = packed["use_bf16"]
    d_in, d_out = dims[0], dims[-1]
    assert x.shape[1] == d_in

    B = x.shape[0]
    BP = _round_up(B, 8)                         # sublane-aligned rows
    S = len(eps_samples)
    NG = -(-S // G)                              # sample groups (G samples per group)
    CG = max(1, min(groups_per_step, NG))        # groups processed per grid step
    NGp = _round_up(NG, CG)                      # pad groups to a multiple of CG

    # input replicated into each sample band (zero elsewhere)
    xf = jnp.asarray(x, jnp.float32)
    xp = jnp.zeros((BP, DP), jnp.float32)
    for g in range(G):
        xp = xp.at[:B, g * band:g * band + d_in].set(xf)

    w_eps, b_eps = pack_eps(eps_samples, packed, NGp)

    kernel = _make_bnn_kernel(L, CG, st, use_bf16)

    out = pl.pallas_call(
        kernel,
        out_shape=jax.ShapeDtypeStruct((NGp, BP, DP), jnp.float32),
        grid=(NGp // CG,),
        in_specs=[
            pl.BlockSpec((BP, DP), lambda n: (0, 0)),                 # x        (resident)
            pl.BlockSpec((L, DP, DP), lambda n: (0, 0, 0)),           # w_mu     (resident)
            pl.BlockSpec((L, DP, DP), lambda n: (0, 0, 0)),           # w_sigma  (resident)
            pl.BlockSpec((L, 1, DP), lambda n: (0, 0, 0)),            # b_mu     (resident)
            pl.BlockSpec((L, 1, DP), lambda n: (0, 0, 0)),            # b_sigma  (resident)
            pl.BlockSpec((CG, L, DP, DP), lambda n: (n, 0, 0, 0)),    # w_eps per chunk
            pl.BlockSpec((CG, L, 1, DP), lambda n: (n, 0, 0, 0)),     # b_eps per chunk
        ],
        out_specs=pl.BlockSpec((CG, BP, DP), lambda n: (n, 0, 0)),    # lane-dense output
        compiler_params=pltpu.CompilerParams(
            dimension_semantics=("parallel",),
        ),
    )(xp, packed["w_mu"], packed["w_sig"], packed["b_mu"], packed["b_sig"],
      w_eps, b_eps)

    # slice each sample's band out of its group tile
    return jnp.stack([out[s // G, :B, (s % G) * band:(s % G) * band + d_out]
                      for s in range(S)])


def bnn_forward(x, params, eps, st=False, use_bf16=False, packed=None):
    """Single-sample forward, exactly matching BNNNet.forward."""
    return bnn_forward_mc(x, params, [eps], st=st, use_bf16=use_bf16,
                          packed=packed)[0]


# ----------------------------- test scaffolding ------------------------------

def init_params(key, layers, prior_weight_mu=0.0, prior_weight_sigma=0.2, n_samples=1):
    """Synthetic BayesLinear parameters + pre-sampled N(0,1) noise."""
    params = []
    log_sigma = jnp.log(jnp.float32(prior_weight_sigma))
    for i in range(len(layers) - 1):
        d_in, d_out = layers[i], layers[i + 1]
        key, k1, k2 = jax.random.split(key, 3)
        w_mu = prior_weight_mu + prior_weight_sigma * jax.random.normal(
            k1, (d_out, d_in), jnp.float32)
        b_mu = prior_weight_mu + prior_weight_sigma * jax.random.normal(
            k2, (1, d_out), jnp.float32)
        params.append(dict(
            w_mu=w_mu, w_log_sigma=jnp.full((d_out, d_in), log_sigma, jnp.float32),
            b_mu=b_mu, b_log_sigma=jnp.full((1, d_out), log_sigma, jnp.float32)))
    eps_samples = []
    for _ in range(n_samples):
        es = []
        for i in range(len(layers) - 1):
            d_in, d_out = layers[i], layers[i + 1]
            key, k3, k4 = jax.random.split(key, 3)
            es.append(dict(w_eps=jax.random.normal(k3, (d_out, d_in), jnp.float32),
                           b_eps=jax.random.normal(k4, (1, d_out), jnp.float32)))
        eps_samples.append(es)
    return params, eps_samples


def _ref_forward(x, params, eps, st):
    """Pure-JAX reference of BNNNet.forward (single eps sample)."""
    h = x
    for i, (p, e) in enumerate(zip(params, eps)):
        w = p["w_mu"] + jnp.exp(p["w_log_sigma"]) * e["w_eps"]
        b = p["b_mu"] + jnp.exp(p["b_log_sigma"]) * e["b_eps"]
        h = h @ w.T + b
        if i < len(params) - 1:
            h = jnp.tanh(h)
    if st:
        h = jax.nn.softplus(h) + 1e-6
    return h


if __name__ == "__main__":
    # layers_size = [16, 32, 32, 8] -> two BayesLinear+Tanh blocks + output BayesLinear
    layers = [16, 32, 32, 8]
    B = 8
    S = 6   # Monte-Carlo weight samples; band=32 -> 4 samples packed per 128-lane tile

    key = jax.random.PRNGKey(0)
    key, kx = jax.random.split(key)
    x = jax.random.normal(kx, (B, layers[0]), jnp.float32)
    params, eps_samples = init_params(key, layers, n_samples=S)

    # pack parameters ONCE, reuse for multiple forward calls (f32 / v5e-friendly path)
    packed_f32 = pack_params(params, layers[0], use_bf16=False)

    out_mc = bnn_forward_mc(x, params, eps_samples, st=False,
                            packed=packed_f32)                      # 2 groups, 1 grid step
    out_mc2 = bnn_forward_mc(x, params, eps_samples, st=False,
                             groups_per_step=1, packed=packed_f32)  # 2 grid steps
    out_st = bnn_forward(x, params, eps_samples[0], st=True)        # softplus head
    # bf16 storage + bf16 reparam, f32 accumulate (v6e / v7x path)
    out_bf16 = bnn_forward_mc(x, params, eps_samples, st=False, use_bf16=True)
    jax.block_until_ready((out_mc, out_mc2, out_st, out_bf16))

    ref_mc = jnp.stack([_ref_forward(x, params, es, False) for es in eps_samples])
    ref_st = _ref_forward(x, params, eps_samples[0], True)

    assert out_mc.shape == (S, B, layers[-1])
    assert out_st.shape == (B, layers[-1])
    assert jnp.allclose(out_mc, ref_mc, atol=1e-5, rtol=1e-5)
    assert jnp.allclose(out_mc2, ref_mc, atol=1e-5, rtol=1e-5)
    assert jnp.allclose(out_st, ref_st, atol=1e-5, rtol=1e-5)
    assert jnp.allclose(out_bf16, ref_mc, atol=1e-1, rtol=1e-1)

    print("KERNEL_OK")
</pallas_src>

<mosaic_0001>
module attributes {stable_mosaic.version = 11 : i64} {
  func.func @kernel(%arg0: i32, %arg1: memref<8x128xf32, #tpu.memory_space<vmem>>, %arg2: memref<3x128x128xf32, #tpu.memory_space<vmem>>, %arg3: memref<3x128x128xf32, #tpu.memory_space<vmem>>, %arg4: memref<3x1x128xf32, #tpu.memory_space<vmem>>, %arg5: memref<3x1x128xf32, #tpu.memory_space<vmem>>, %arg6: memref<2x3x128x128xf32, #tpu.memory_space<vmem>>, %arg7: memref<2x3x1x128xf32, #tpu.memory_space<vmem>>, %arg8: memref<2x8x128xf32, #tpu.memory_space<vmem>>) attributes {dimension_semantics = [#tpu.dimension_semantics<parallel>], iteration_bounds = array<i64: 1>, scalar_prefetch = 0 : i64, scratch_operands = 0 : i64, tpu.core_type = #tpu.core_type<tc>, window_params = [{pipeline_mode = #tpu.pipeline_mode<synchronous>, transform_indices = @transform_0, window_bounds = array<i64: 8, 128>}, {pipeline_mode = #tpu.pipeline_mode<synchronous>, transform_indices = @transform_1, window_bounds = array<i64: 3, 128, 128>}, {pipeline_mode = #tpu.pipeline_mode<synchronous>, transform_indices = @transform_2, window_bounds = array<i64: 3, 128, 128>}, {pipeline_mode = #tpu.pipeline_mode<synchronous>, transform_indices = @transform_3, window_bounds = array<i64: 3, 1, 128>}, {pipeline_mode = #tpu.pipeline_mode<synchronous>, transform_indices = @transform_4, window_bounds = array<i64: 3, 1, 128>}, {transform_indices = @transform_5, window_bounds = array<i64: 2, 3, 128, 128>}, {transform_indices = @transform_6, window_bounds = array<i64: 2, 3, 1, 128>}, {transform_indices = @transform_7, window_bounds = array<i64: 2, 8, 128>}]} {
    %c0 = arith.constant 0 : index
    %c0_0 = arith.constant 0 : index
    %0 = vector.load %arg1[%c0, %c0_0] : memref<8x128xf32, #tpu.memory_space<vmem>>, vector<8x128xf32>
    %c0_1 = arith.constant 0 : index
    %c0_2 = arith.constant 0 : index
    %c0_3 = arith.constant 0 : index
    %1 = vector.load %arg2[%c0_1, %c0_2, %c0_3] : memref<3x128x128xf32, #tpu.memory_space<vmem>>, vector<1x128x128xf32>
    %2 = vector.shape_cast %1 : vector<1x128x128xf32> to vector<128x128xf32>
    %c0_4 = arith.constant 0 : index
    %c0_5 = arith.constant 0 : index
    %c0_6 = arith.constant 0 : index
    %3 = vector.load %arg3[%c0_4, %c0_5, %c0_6] : memref<3x128x128xf32, #tpu.memory_space<vmem>>, vector<1x128x128xf32>
    %4 = vector.shape_cast %3 : vector<1x128x128xf32> to vector<128x128xf32>
    %c0_7 = arith.constant 0 : index
    %c0_8 = arith.constant 0 : index
    %c0_9 = arith.constant 0 : index
    %c0_10 = arith.constant 0 : index
    %5 = vector.load %arg6[%c0_7, %c0_8, %c0_9, %c0_10] : memref<2x3x128x128xf32, #tpu.memory_space<vmem>>, vector<1x1x128x128xf32>
    %6 = vector.shape_cast %5 : vector<1x1x128x128xf32> to vector<128x128xf32>
    %7 = arith.mulf %4, %6 : vector<128x128xf32>
    %8 = arith.addf %2, %7 : vector<128x128xf32>
    %c0_11 = arith.constant 0 : index
    %c0_12 = arith.constant 0 : index
    %c0_13 = arith.constant 0 : index
    %9 = vector.load %arg4[%c0_11, %c0_12, %c0_13] : memref<3x1x128xf32, #tpu.memory_space<vmem>>, vector<1x1x128xf32>
    %10 = vector.shape_cast %9 : vector<1x1x128xf32> to vector<1x128xf32>
    %c0_14 = arith.constant 0 : index
    %c0_15 = arith.constant 0 : index
    %c0_16 = arith.constant 0 : index
    %11 = vector.load %arg5[%c0_14, %c0_15, %c0_16] : memref<3x1x128xf32, #tpu.memory_space<vmem>>, vector<1x1x128xf32>
    %12 = vector.shape_cast %11 : vector<1x1x128xf32> to vector<1x128xf32>
    %c0_17 = arith.constant 0 : index
    %c0_18 = arith.constant 0 : index
    %c0_19 = arith.constant 0 : index
    %c0_20 = arith.constant 0 : index
    %13 = vector.load %arg7[%c0_17, %c0_18, %c0_19, %c0_20] : memref<2x3x1x128xf32, #tpu.memory_space<vmem>>, vector<1x1x1x128xf32>
    %14 = vector.shape_cast %13 : vector<1x1x1x128xf32> to vector<1x128xf32>
    %15 = arith.mulf %12, %14 : vector<1x128xf32>
    %16 = arith.addf %10, %15 : vector<1x128xf32>
    %cst = arith.constant dense<0.000000e+00> : vector<8x128xf32>
    %17 = tpu.matmul %0, %8, %cst {dimension_numbers = #tpu.dot_dimension_numbers<[1], [0], [0], [1], [0, 0, 1, 1], [], []>} : vector<8x128xf32>, vector<128x128xf32>, vector<8x128xf32> -> vector<8x128xf32>
    %18 = vector.broadcast %16 : vector<1x128xf32> to vector<8x128xf32>
    %19 = arith.addf %17, %18 : vector<8x128xf32>
    %20 = math.tanh %19 : vector<8x128xf32>
    %c1 = arith.constant 1 : index
    %c0_21 = arith.constant 0 : index
    %c0_22 = arith.constant 0 : index
    %21 = vector.load %arg2[%c1, %c0_21, %c0_22] : memref<3x128x128xf32, #tpu.memory_space<vmem>>, vector<1x128x128xf32>
    %22 = vector.shape_cast %21 : vector<1x128x128xf32> to vector<128x128xf32>
    %c1_23 = arith.constant 1 : index
    %c0_24 = arith.constant 0 : index
    %c0_25 = arith.constant 0 : index
    %23 = vector.load %arg3[%c1_23, %c0_24, %c0_25] : memref<3x128x128xf32, #tpu.memory_space<vmem>>, vector<1x128x128xf32>
    %24 = vector.shape_cast %23 : vector<1x128x128xf32> to vector<128x128xf32>
    %c0_26 = arith.constant 0 : index
    %c1_27 = arith.constant 1 : index
    %c0_28 = arith.constant 0 : index
    %c0_29 = arith.constant 0 : index
    %25 = vector.load %arg6[%c0_26, %c1_27, %c0_28, %c0_29] : memref<2x3x128x128xf32, #tpu.memory_space<vmem>>, vector<1x1x128x128xf32>
    %26 = vector.shape_cast %25 : vector<1x1x128x128xf32> to vector<128x128xf32>
    %27 = arith.mulf %24, %26 : vector<128x128xf32>
    %28 = arith.addf %22, %27 : vector<128x128xf32>
    %c1_30 = arith.constant 1 : index
    %c0_31 = arith.constant 0 : index
    %c0_32 = arith.constant 0 : index
    %29 = vector.load %arg4[%c1_30, %c0_31, %c0_32] : memref<3x1x128xf32, #tpu.memory_space<vmem>>, vector<1x1x128xf32>
    %30 = vector.shape_cast %29 : vector<1x1x128xf32> to vector<1x128xf32>
    %c1_33 = arith.constant 1 : index
    %c0_34 = arith.constant 0 : index
    %c0_35 = arith.constant 0 : index
    %31 = vector.load %arg5[%c1_33, %c0_34, %c0_35] : memref<3x1x128xf32, #tpu.memory_space<vmem>>, vector<1x1x128xf32>
    %32 = vector.shape_cast %31 : vector<1x1x128xf32> to vector<1x128xf32>
    %c0_36 = arith.constant 0 : index
    %c1_37 = arith.constant 1 : index
    %c0_38 = arith.constant 0 : index
    %c0_39 = arith.constant 0 : index
    %33 = vector.load %arg7[%c0_36, %c1_37, %c0_38, %c0_39] : memref<2x3x1x128xf32, #tpu.memory_space<vmem>>, vector<1x1x1x128xf32>
    %34 = vector.shape_cast %33 : vector<1x1x1x128xf32> to vector<1x128xf32>
    %35 = arith.mulf %32, %34 : vector<1x128xf32>
    %36 = arith.addf %30, %35 : vector<1x128xf32>
    %cst_40 = arith.constant dense<0.000000e+00> : vector<8x128xf32>
    %37 = tpu.matmul %20, %28, %cst_40 {dimension_numbers = #tpu.dot_dimension_numbers<[1], [0], [0], [1], [0, 0, 1, 1], [], []>} : vector<8x128xf32>, vector<128x128xf32>, vector<8x128xf32> -> vector<8x128xf32>
    %38 = vector.broadcast %36 : vector<1x128xf32> to vector<8x128xf32>
    %39 = arith.addf %37, %38 : vector<8x128xf32>
    %40 = math.tanh %39 : vector<8x128xf32>
    %c2 = arith.constant 2 : index
    %c0_41 = arith.constant 0 : index
    %c0_42 = arith.constant 0 : index
    %41 = vector.load %arg2[%c2, %c0_41, %c0_42] : memref<3x128x128xf32, #tpu.memory_space<vmem>>, vector<1x128x128xf32>
    %42 = vector.shape_cast %41 : vector<1x128x128xf32> to vector<128x128xf32>
    %c2_43 = arith.constant 2 : index
    %c0_44 = arith.constant 0 : index
    %c0_45 = arith.constant 0 : index
    %43 = vector.load %arg3[%c2_43, %c0_44, %c0_45] : memref<3x128x128xf32, #tpu.memory_space<vmem>>, vector<1x128x128xf32>
    %44 = vector.shape_cast %43 : vector<1x128x128xf32> to vector<128x128xf32>
    %c0_46 = arith.constant 0 : index
    %c2_47 = arith.constant 2 : index
    %c0_48 = arith.constant 0 : index
    %c0_49 = arith.constant 0 : index
    %45 = vector.load %arg6[%c0_46, %c2_47, %c0_48, %c0_49] : memref<2x3x128x128xf32, #tpu.memory_space<vmem>>, vector<1x1x128x128xf32>
    %46 = vector.shape_cast %45 : vector<1x1x128x128xf32> to vector<128x128xf32>
    %47 = arith.mulf %44, %46 : vector<128x128xf32>
    %48 = arith.addf %42, %47 : vector<128x128xf32>
    %c2_50 = arith.constant 2 : index
    %c0_51 = arith.constant 0 : index
    %c0_52 = arith.constant 0 : index
    %49 = vector.load %arg4[%c2_50, %c0_51, %c0_52] : memref<3x1x128xf32, #tpu.memory_space<vmem>>, vector<1x1x128xf32>
    %50 = vector.shape_cast %49 : vector<1x1x128xf32> to vector<1x128xf32>
    %c2_53 = arith.constant 2 : index
    %c0_54 = arith.constant 0 : index
    %c0_55 = arith.constant 0 : index
    %51 = vector.load %arg5[%c2_53, %c0_54, %c0_55] : memref<3x1x128xf32, #tpu.memory_space<vmem>>, vector<1x1x128xf32>
    %52 = vector.shape_cast %51 : vector<1x1x128xf32> to vector<1x128xf32>
    %c0_56 = arith.constant 0 : index
    %c2_57 = arith.constant 2 : index
    %c0_58 = arith.constant 0 : index
    %c0_59 = arith.constant 0 : index
    %53 = vector.load %arg7[%c0_56, %c2_57, %c0_58, %c0_59] : memref<2x3x1x128xf32, #tpu.memory_space<vmem>>, vector<1x1x1x128xf32>
    %54 = vector.shape_cast %53 : vector<1x1x1x128xf32> to vector<1x128xf32>
    %55 = arith.mulf %52, %54 : vector<1x128xf32>
    %56 = arith.addf %50, %55 : vector<1x128xf32>
    %cst_60 = arith.constant dense<0.000000e+00> : vector<8x128xf32>
    %57 = tpu.matmul %40, %48, %cst_60 {dimension_numbers = #tpu.dot_dimension_numbers<[1], [0], [0], [1], [0, 0, 1, 1], [], []>} : vector<8x128xf32>, vector<128x128xf32>, vector<8x128xf32> -> vector<8x128xf32>
    %58 = vector.broadcast %56 : vector<1x128xf32> to vector<8x128xf32>
    %59 = arith.addf %57, %58 : vector<8x128xf32>
    %c0_61 = arith.constant 0 : index
    %c0_62 = arith.constant 0 : index
    %c0_63 = arith.constant 0 : index
    %60 = vector.load %arg8[%c0_61, %c0_62, %c0_63] : memref<2x8x128xf32, #tpu.memory_space<vmem>>, vector<1x8x128xf32>
    %61 = vector.shape_cast %60 : vector<1x8x128xf32> to vector<8x128xf32>
    %62 = vector.shape_cast %59 : vector<8x128xf32> to vector<1x8x128xf32>
    tpu.vector_store %arg8[%c0_61, %c0_62, %c0_63], %62 {strides = array<i32>} : memref<2x8x128xf32, #tpu.memory_space<vmem>>, vector<1x8x128xf32>,
    %c0_64 = arith.constant 0 : index
    %c0_65 = arith.constant 0 : index
    %c0_66 = arith.constant 0 : index
    %63 = vector.load %arg2[%c0_64, %c0_65, %c0_66] : memref<3x128x128xf32, #tpu.memory_space<vmem>>, vector<1x128x128xf32>
    %64 = vector.shape_cast %63 : vector<1x128x128xf32> to vector<128x128xf32>
    %c0_67 = arith.constant 0 : index
    %c0_68 = arith.constant 0 : index
    %c0_69 = arith.constant 0 : index
    %65 = vector.load %arg3[%c0_67, %c0_68, %c0_69] : memref<3x128x128xf32, #tpu.memory_space<vmem>>, vector<1x128x128xf32>
    %66 = vector.shape_cast %65 : vector<1x128x128xf32> to vector<128x128xf32>
    %c1_70 = arith.constant 1 : index
    %c0_71 = arith.constant 0 : index
    %c0_72 = arith.constant 0 : index
    %c0_73 = arith.constant 0 : index
    %67 = vector.load %arg6[%c1_70, %c0_71, %c0_72, %c0_73] : memref<2x3x128x128xf32, #tpu.memory_space<vmem>>, vector<1x1x128x128xf32>
    %68 = vector.shape_cast %67 : vector<1x1x128x128xf32> to vector<128x128xf32>
    %69 = arith.mulf %66, %68 : vector<128x128xf32>
    %70 = arith.addf %64, %69 : vector<128x128xf32>
    %c0_74 = arith.constant 0 : index
    %c0_75 = arith.constant 0 : index
    %c0_76 = arith.constant 0 : index
    %71 = vector.load %arg4[%c0_74, %c0_75, %c0_76] : memref<3x1x128xf32, #tpu.memory_space<vmem>>, vector<1x1x128xf32>
    %72 = vector.shape_cast %71 : vector<1x1x128xf32> to vector<1x128xf32>
    %c0_77 = arith.constant 0 : index
    %c0_78 = arith.constant 0 : index
    %c0_79 = arith.constant 0 : index
    %73 = vector.load %arg5[%c0_77, %c0_78, %c0_79] : memref<3x1x128xf32, #tpu.memory_space<vmem>>, vector<1x1x128xf32>
    %74 = vector.shape_cast %73 : vector<1x1x128xf32> to vector<1x128xf32>
    %c1_80 = arith.constant 1 : index
    %c0_81 = arith.constant 0 : index
    %c0_82 = arith.constant 0 : index
    %c0_83 = arith.constant 0 : index
    %75 = vector.load %arg7[%c1_80, %c0_81, %c0_82, %c0_83] : memref<2x3x1x128xf32, #tpu.memory_space<vmem>>, vector<1x1x1x128xf32>
    %76 = vector.shape_cast %75 : vector<1x1x1x128xf32> to vector<1x128xf32>
    %77 = arith.mulf %74, %76 : vector<1x128xf32>
    %78 = arith.addf %72, %77 : vector<1x128xf32>
    %cst_84 = arith.constant dense<0.000000e+00> : vector<8x128xf32>
    %79 = tpu.matmul %0, %70, %cst_84 {dimension_numbers = #tpu.dot_dimension_numbers<[1], [0], [0], [1], [0, 0, 1, 1], [], []>} : vector<8x128xf32>, vector<128x128xf32>, vector<8x128xf32> -> vector<8x128xf32>
    %80 = vector.broadcast %78 : vector<1x128xf32> to vector<8x128xf32>
    %81 = arith.addf %79, %80 : vector<8x128xf32>
    %82 = math.tanh %81 : vector<8x128xf32>
    %c1_85 = arith.constant 1 : index
    %c0_86 = arith.constant 0 : index
    %c0_87 = arith.constant 0 : index
    %83 = vector.load %arg2[%c1_85, %c0_86, %c0_87] : memref<3x128x128xf32, #tpu.memory_space<vmem>>, vector<1x128x128xf32>
    %84 = vector.shape_cast %83 : vector<1x128x128xf32> to vector<128x128xf32>
    %c1_88 = arith.constant 1 : index
    %c0_89 = arith.constant 0 : index
    %c0_90 = arith.constant 0 : index
    %85 = vector.load %arg3[%c1_88, %c0_89, %c0_90] : memref<3x128x128xf32, #tpu.memory_space<vmem>>, vector<1x128x128xf32>
    %86 = vector.shape_cast %85 : vector<1x128x128xf32> to vector<128x128xf32>
    %c1_91 = arith.constant 1 : index
    %c1_92 = arith.constant 1 : index
    %c0_93 = arith.constant 0 : index
    %c0_94 = arith.constant 0 : index
    %87 = vector.load %arg6[%c1_91, %c1_92, %c0_93, %c0_94] : memref<2x3x128x128xf32, #tpu.memory_space<vmem>>, vector<1x1x128x128xf32>
    %88 = vector.shape_cast %87 : vector<1x1x128x128xf32> to vector<128x128xf32>
    %89 = arith.mulf %86, %88 : vector<128x128xf32>
    %90 = arith.addf %84, %89 : vector<128x128xf32>
    %c1_95 = arith.constant 1 : index
    %c0_96 = arith.constant 0 : index
    %c0_97 = arith.constant 0 : index
    %91 = vector.load %arg4[%c1_95, %c0_96, %c0_97] : memref<3x1x128xf32, #tpu.memory_space<vmem>>, vector<1x1x128xf32>
    %92 = vector.shape_cast %91 : vector<1x1x128xf32> to vector<1x128xf32>
    %c1_98 = arith.constant 1 : index
    %c0_99 = arith.constant 0 : index
    %c0_100 = arith.constant 0 : index
    %93 = vector.load %arg5[%c1_98, %c0_99, %c0_100] : memref<3x1x128xf32, #tpu.memory_space<vmem>>, vector<1x1x128xf32>
    %94 = vector.shape_cast %93 : vector<1x1x128xf32> to vector<1x128xf32>
    %c1_101 = arith.constant 1 : index
    %c1_102 = arith.constant 1 : index
    %c0_103 = arith.constant 0 : index
    %c0_104 = arith.constant 0 : index
    %95 = vector.load %arg7[%c1_101, %c1_102, %c0_103, %c0_104] : memref<2x3x1x128xf32, #tpu.memory_space<vmem>>, vector<1x1x1x128xf32>
    %96 = vector.shape_cast %95 : vector<1x1x1x128xf32> to vector<1x128xf32>
    %97 = arith.mulf %94, %96 : vector<1x128xf32>
    %98 = arith.addf %92, %97 : vector<1x128xf32>
    %cst_105 = arith.constant dense<0.000000e+00> : vector<8x128xf32>
    %99 = tpu.matmul %82, %90, %cst_105 {dimension_numbers = #tpu.dot_dimension_numbers<[1], [0], [0], [1], [0, 0, 1, 1], [], []>} : vector<8x128xf32>, vector<128x128xf32>, vector<8x128xf32> -> vector<8x128xf32>
    %100 = vector.broadcast %98 : vector<1x128xf32> to vector<8x128xf32>
    %101 = arith.addf %99, %100 : vector<8x128xf32>
    %102 = math.tanh %101 : vector<8x128xf32>
    %c2_106 = arith.constant 2 : index
    %c0_107 = arith.constant 0 : index
    %c0_108 = arith.constant 0 : index
    %103 = vector.load %arg2[%c2_106, %c0_107, %c0_108] : memref<3x128x128xf32, #tpu.memory_space<vmem>>, vector<1x128x128xf32>
    %104 = vector.shape_cast %103 : vector<1x128x128xf32> to vector<128x128xf32>
    %c2_109 = arith.constant 2 : index
    %c0_110 = arith.constant 0 : index
    %c0_111 = arith.constant 0 : index
    %105 = vector.load %arg3[%c2_109, %c0_110, %c0_111] : memref<3x128x128xf32, #tpu.memory_space<vmem>>, vector<1x128x128xf32>
    %106 = vector.shape_cast %105 : vector<1x128x128xf32> to vector<128x128xf32>
    %c1_112 = arith.constant 1 : index
    %c2_113 = arith.constant 2 : index
    %c0_114 = arith.constant 0 : index
    %c0_115 = arith.constant 0 : index
    %107 = vector.load %arg6[%c1_112, %c2_113, %c0_114, %c0_115] : memref<2x3x128x128xf32, #tpu.memory_space<vmem>>, vector<1x1x128x128xf32>
    %108 = vector.shape_cast %107 : vector<1x1x128x128xf32> to vector<128x128xf32>
    %109 = arith.mulf %106, %108 : vector<128x128xf32>
    %110 = arith.addf %104, %109 : vector<128x128xf32>
    %c2_116 = arith.constant 2 : index
    %c0_117 = arith.constant 0 : index
    %c0_118 = arith.constant 0 : index
    %111 = vector.load %arg4[%c2_116, %c0_117, %c0_118] : memref<3x1x128xf32, #tpu.memory_space<vmem>>, vector<1x1x128xf32>
    %112 = vector.shape_cast %111 : vector<1x1x128xf32> to vector<1x128xf32>
    %c2_119 = arith.constant 2 : index
    %c0_120 = arith.constant 0 : index
    %c0_121 = arith.constant 0 : index
    %113 = vector.load %arg5[%c2_119, %c0_120, %c0_121] : memref<3x1x128xf32, #tpu.memory_space<vmem>>, vector<1x1x128xf32>
    %114 = vector.shape_cast %113 : vector<1x1x128xf32> to vector<1x128xf32>
    %c1_122 = arith.constant 1 : index
    %c2_123 = arith.constant 2 : index
    %c0_124 = arith.constant 0 : index
    %c0_125 = arith.constant 0 : index
    %115 = vector.load %arg7[%c1_122, %c2_123, %c0_124, %c0_125] : memref<2x3x1x128xf32, #tpu.memory_space<vmem>>, vector<1x1x1x128xf32>
    %116 = vector.shape_cast %115 : vector<1x1x1x128xf32> to vector<1x128xf32>
    %117 = arith.mulf %114, %116 : vector<1x128xf32>
    %118 = arith.addf %112, %117 : vector<1x128xf32>
    %cst_126 = arith.constant dense<0.000000e+00> : vector<8x128xf32>
    %119 = tpu.matmul %102, %110, %cst_126 {dimension_numbers = #tpu.dot_dimension_numbers<[1], [0], [0], [1], [0, 0, 1, 1], [], []>} : vector<8x128xf32>, vector<128x128xf32>, vector<8x128xf32> -> vector<8x128xf32>
    %120 = vector.broadcast %118 : vector<1x128xf32> to vector<8x128xf32>
    %121 = arith.addf %119, %120 : vector<8x128xf32>
    %c1_127 = arith.constant 1 : index
    %c0_128 = arith.constant 0 : index
    %c0_129 = arith.constant 0 : index
    %122 = vector.load %arg8[%c1_127, %c0_128, %c0_129] : memref<2x8x128xf32, #tpu.memory_space<vmem>>, vector<1x8x128xf32>
    %123 = vector.shape_cast %122 : vector<1x8x128xf32> to vector<8x128xf32>
    %124 = vector.shape_cast %121 : vector<8x128xf32> to vector<1x8x128xf32>
    tpu.vector_store %arg8[%c1_127, %c0_128, %c0_129], %124 {strides = array<i32>} : memref<2x8x128xf32, #tpu.memory_space<vmem>>, vector<1x8x128xf32>,
    return
  }
  func.func @transform_0(%arg0: i32) -> (i32, i32) {
    %c0_i32 = arith.constant 0 : i32
    %c0_i32_0 = arith.constant 0 : i32
    %c0_i32_1 = arith.constant 0 : i32
    return %c0_i32, %c0_i32_0 : i32, i32
  }
  func.func @transform_1(%arg0: i32) -> (i32, i32, i32) {
    %c0_i32 = arith.constant 0 : i32
    %c0_i32_0 = arith.constant 0 : i32
    %c0_i32_1 = arith.constant 0 : i32
    %c0_i32_2 = arith.constant 0 : i32
    return %c0_i32, %c0_i32_0, %c0_i32_1 : i32, i32, i32
  }
  func.func @transform_2(%arg0: i32) -> (i32, i32, i32) {
    %c0_i32 = arith.constant 0 : i32
    %c0_i32_0 = arith.constant 0 : i32
    %c0_i32_1 = arith.constant 0 : i32
    %c0_i32_2 = arith.constant 0 : i32
    return %c0_i32, %c0_i32_0, %c0_i32_1 : i32, i32, i32
  }
  func.func @transform_3(%arg0: i32) -> (i32, i32, i32) {
    %c0_i32 = arith.constant 0 : i32
    %c0_i32_0 = arith.constant 0 : i32
    %c0_i32_1 = arith.constant 0 : i32
    %c0_i32_2 = arith.constant 0 : i32
    return %c0_i32, %c0_i32_0, %c0_i32_1 : i32, i32, i32
  }
  func.func @transform_4(%arg0: i32) -> (i32, i32, i32) {
    %c0_i32 = arith.constant 0 : i32
    %c0_i32_0 = arith.constant 0 : i32
    %c0_i32_1 = arith.constant 0 : i32
    %c0_i32_2 = arith.constant 0 : i32
    return %c0_i32, %c0_i32_0, %c0_i32_1 : i32, i32, i32
  }
  func.func @transform_5(%arg0: i32) -> (i32, i32, i32, i32) {
    %c0_i32 = arith.constant 0 : i32
    %c0_i32_0 = arith.constant 0 : i32
    %c0_i32_1 = arith.constant 0 : i32
    %c0_i32_2 = arith.constant 0 : i32
    return %arg0, %c0_i32, %c0_i32_0, %c0_i32_1 : i32, i32, i32, i32
  }
  func.func @transform_6(%arg0: i32) -> (i32, i32, i32, i32) {
    %c0_i32 = arith.constant 0 : i32
    %c0_i32_0 = arith.constant 0 : i32
    %c0_i32_1 = arith.constant 0 : i32
    %c0_i32_2 = arith.constant 0 : i32
    return %arg0, %c0_i32, %c0_i32_0, %c0_i32_1 : i32, i32, i32, i32
  }
  func.func @transform_7(%arg0: i32) -> (i32, i32, i32) {
    %c0_i32 = arith.constant 0 : i32
    %c0_i32_0 = arith.constant 0 : i32
    %c0_i32_1 = arith.constant 0 : i32
    return %arg0, %c0_i32, %c0_i32_0 : i32, i32, i32
  }
}

</mosaic_0001>

<llo_original>
// kernel: tpu_custom_call.1
$region0: #{tpu_custom_call.1}
  #allocation0 [shape = 'u32[]', space=smem, size = 0x4, offset = 0x4, fixed_abs, tag = 'smem constant byte address 0x4 - core index']
  #allocation1 [shape = 'u32[144,128]{1,0:T(1,128)}', space=vmem, size = 0x12000, scoped, tag = 'internal scratch']
  %s0 = inlined_call_operand.hbm [shape: f32[8,128], index: 0, kind: input, shape index: {}]
  %s1 = inlined_call_operand.hbm [shape: f32[3,128,128], index: 1, kind: input, shape index: {}]
  %s2 = inlined_call_operand.hbm [shape: f32[3,128,128], index: 2, kind: input, shape index: {}]
  %s3 = inlined_call_operand.vmem [shape: f32[3,1,128], index: 3, kind: input, shape index: {}]
  %s4 = inlined_call_operand.hbm [shape: f32[3,1,128], index: 4, kind: input, shape index: {}]
  %s5 = inlined_call_operand.hbm [shape: f32[2,3,128,128], index: 5, kind: input, shape index: {}]
  %s6 = inlined_call_operand.vmem [shape: f32[2,3,1,128], index: 6, kind: input, shape index: {}]
  %s7 = inlined_call_operand.hbm [shape: f32[2,8,128], index: 7, kind: output, shape index: {}]
  %s8 = sld [smem:[#allocation0]]
  $region58: #{tpu_custom_call.1} parent=0
    _
  %s10 = ssub.s32 1, %s8
  %s11 = scalar_select 0, %s10, %s8
  $region1: #{tpu_custom_call.1} parent=0
    #allocation2 [shape = 'u8[4096]{0}', space=vmem, size = 0x1000, scoped, tag = 'input window, operand 0, single buffered']
    #allocation3 [shape = 's32[1]{0}', space=sflag, size = 0x4, scoped, tag = 'scoped memory for tpu_custom_call.1']
    #allocation4 [shape = 's32[1]{0}', space=sflag, size = 0x4, scoped, tag = 'scoped memory for tpu_custom_call.1']
    #allocation5 [shape = 'u8[196608]{0}', space=vmem, size = 0x30000, scoped, tag = 'input window, operand 1, single buffered']
    #allocation6 [shape = 's32[1]{0}', space=sflag, size = 0x4, scoped, tag = 'scoped memory for tpu_custom_call.1']
    #allocation7 [shape = 'u8[196608]{0}', space=vmem, size = 0x30000, scoped, tag = 'input window, operand 2, single buffered']
    #allocation8 [shape = 'u8[1536]{0}', space=vmem, size = 0x800, scoped, tag = 'input window, operand 4, single buffered']
    #allocation9 [shape = 's32[1]{0}', space=sflag, size = 0x4, scoped, tag = 'scoped memory for tpu_custom_call.1']
    #allocation10 [shape = 'u8[393216]{0}', space=vmem, size = 0x60000, scoped, tag = 'input window, operand 5, single buffered']
    #allocation11 [shape = 'u8[8192]{0}', space=vmem, size = 0x2000, scoped, tag = 'output window, operand 0, single buffered']
    %12 = vsyncpa [#allocation3], 0
    %13 = vsyncpa [#allocation6], 0
    %14 = vsyncpa [#allocation9], 0
    %15 = vsyncpa [#allocation4], 0
    // Predicated region
    $region2: #{tpu_custom_call.1} parent=1 // pred_check
      _
    $region3: #{tpu_custom_call.1} parent=1 // pred_check_branch
      %17 = sbr.rel (0) target = $region5
    $region4: #{tpu_custom_call.1} parent=1 // pred_region
      %s19 = ssub.s32 128, 128
      %20 = vsyncadd [#allocation3], %s19
      %s22 = sshll.u32 [#allocation2], 4
      %s23 = int_to_ptr.vmem [resolvable:$true] %s22
      %25 = dma.hbm_to_vmem [thread:$0]  %s0, 128, %s23, [#allocation3]
    $region5: #{tpu_custom_call.1} parent=1 // pred_fallthru
      _
    // Predicated region
    $region6: #{tpu_custom_call.1} parent=1 // pred_check
      _
    $region7: #{tpu_custom_call.1} parent=1 // pred_check_branch
      %27 = sbr.rel (0) target = $region9
    $region8: #{tpu_custom_call.1} parent=1 // pred_region
      %s29 = ssub.s32 6144, 6144
      %30 = vsyncadd [#allocation6], %s29
      %s31 = sshll.u32 [#allocation5], 4
      %s32 = int_to_ptr.vmem [resolvable:$true] %s31
      %37 = dma.hbm_to_vmem [thread:$0]  %s1, 6144, %s32, [#allocation6], 128, 128, 8
    $region9: #{tpu_custom_call.1} parent=1 // pred_fallthru
      _
    // Predicated region
    $region10: #{tpu_custom_call.1} parent=1 // pred_check
      _
    $region11: #{tpu_custom_call.1} parent=1 // pred_check_branch
      %39 = sbr.rel (0) target = $region13
    $region12: #{tpu_custom_call.1} parent=1 // pred_region
      %s41 = ssub.s32 6144, 6144
      %42 = vsyncadd [#allocation6], %s41
      %s43 = sshll.u32 [#allocation7], 4
      %s44 = int_to_ptr.vmem [resolvable:$true] %s43
      %49 = dma.hbm_to_vmem [thread:$0]  %s2, 6144, %s44, [#allocation6], 128, 128, 8
    $region13: #{tpu_custom_call.1} parent=1 // pred_fallthru
      _
    // Predicated region
    $region14: #{tpu_custom_call.1} parent=1 // pred_check
      _
    $region15: #{tpu_custom_call.1} parent=1 // pred_check_branch
      %51 = sbr.rel (0) target = $region17
    $region16: #{tpu_custom_call.1} parent=1 // pred_region
      _
    $region17: #{tpu_custom_call.1} parent=1 // pred_fallthru
      _
    // Predicated region
    $region18: #{tpu_custom_call.1} parent=1 // pred_check
      _
    $region19: #{tpu_custom_call.1} parent=1 // pred_check_branch
      %53 = sbr.rel (0) target = $region21
    $region20: #{tpu_custom_call.1} parent=1 // pred_region
      %s55 = ssub.s32 48, 48
      %56 = vsyncadd [#allocation9], %s55
      %s57 = sshll.u32 [#allocation8], 4
      %s58 = int_to_ptr.vmem [resolvable:$true] %s57
      %63 = dma.hbm_to_vmem [thread:$0]  %s4, 48, %s58, [#allocation9], 16, 16, 1
    $region21: #{tpu_custom_call.1} parent=1 // pred_fallthru
      _
    // Predicated region
    $region22: #{tpu_custom_call.1} parent=1 // pred_check
      _
    $region23: #{tpu_custom_call.1} parent=1 // pred_check_branch
      %65 = sbr.rel (0) target = $region25
    $region24: #{tpu_custom_call.1} parent=1 // pred_region
      %s67 = ssub.s32 12288, 12288
      %68 = vsyncadd [#allocation9], %s67
      %s69 = sshll.u32 [#allocation10], 4
      %s70 = int_to_ptr.vmem [resolvable:$true] %s69
      %75 = dma.hbm_to_vmem [thread:$0]  %s5, 12288, %s70, [#allocation9], 128, 128, 8
    $region25: #{tpu_custom_call.1} parent=1 // pred_fallthru
      _
    // Predicated region
    $region26: #{tpu_custom_call.1} parent=1 // pred_check
      _
    $region27: #{tpu_custom_call.1} parent=1 // pred_check_branch
      %77 = sbr.rel (0) target = $region29
    $region28: #{tpu_custom_call.1} parent=1 // pred_region
      _
    $region29: #{tpu_custom_call.1} parent=1 // pred_fallthru
      _
    // Predicated region
    $region30: #{tpu_custom_call.1} parent=1 // pred_check
      _
    $region31: #{tpu_custom_call.1} parent=1 // pred_check_branch
      %79 = sbr.rel (0) target = $region33
    $region32: #{tpu_custom_call.1} parent=1 // pred_region
      %80 = dma.done [#allocation3], 128
    $region33: #{tpu_custom_call.1} parent=1 // pred_fallthru
      _
    // Predicated region
    $region34: #{tpu_custom_call.1} parent=1 // pred_check
      _
    $region35: #{tpu_custom_call.1} parent=1 // pred_check_branch
      %82 = sbr.rel (0) target = $region37
    $region36: #{tpu_custom_call.1} parent=1 // pred_region
      %83 = dma.done [#allocation6], 6144
    $region37: #{tpu_custom_call.1} parent=1 // pred_fallthru
      _
    // Predicated region
    $region38: #{tpu_custom_call.1} parent=1 // pred_check
      _
    $region39: #{tpu_custom_call.1} parent=1 // pred_check_branch
      %85 = sbr.rel (0) target = $region41
    $region40: #{tpu_custom_call.1} parent=1 // pred_region
      %86 = dma.done [#allocation6], 6144
    $region41: #{tpu_custom_call.1} parent=1 // pred_fallthru
      _
    // Predicated region
    $region42: #{tpu_custom_call.1} parent=1 // pred_check
      _
    $region43: #{tpu_custom_call.1} parent=1 // pred_check_branch
      %88 = sbr.rel (0) target = $region45
    $region44: #{tpu_custom_call.1} parent=1 // pred_region
      %89 = dma.done [#allocation9], 48
    $region45: #{tpu_custom_call.1} parent=1 // pred_fallthru
      _
    // Predicated region
    $region46: #{tpu_custom_call.1} parent=1 // pred_check
      _
    $region47: #{tpu_custom_call.1} parent=1 // pred_check_branch
      %91 = sbr.rel (0) target = $region49
    $region48: #{tpu_custom_call.1} parent=1 // pred_region
      %92 = dma.done [#allocation9], 12288
    $region49: #{tpu_custom_call.1} parent=1 // pred_fallthru
      _
    %v93 = vld [vmem:[#allocation2] sm:$0xff]
    %v94 = vld [vmem:[#allocation5] sm:$0xff]
    %v95 = vld [vmem:[#allocation5 + $0x8] sm:$0xff]
    %v96 = vld [vmem:[#allocation5 + $0x10] sm:$0xff]
    %v97 = vld [vmem:[#allocation5 + $0x18] sm:$0xff]
    %v98 = vld [vmem:[#allocation5 + $0x20] sm:$0xff]
    %v99 = vld [vmem:[#allocation5 + $0x28] sm:$0xff]
    %v100 = vld [vmem:[#allocation5 + $0x30] sm:$0xff]
    %v101 = vld [vmem:[#allocation5 + $0x38] sm:$0xff]
    %v102 = vld [vmem:[#allocation5 + $0x40] sm:$0xff]
    %v103 = vld [vmem:[#allocation5 + $0x48] sm:$0xff]
    %v104 = vld [vmem:[#allocation5 + $0x50] sm:$0xff]
    %v105 = vld [vmem:[#allocation5 + $0x58] sm:$0xff]
    %v106 = vld [vmem:[#allocation5 + $0x60] sm:$0xff]
    %v107 = vld [vmem:[#allocation5 + $0x68] sm:$0xff]
    %v108 = vld [vmem:[#allocation5 + $0x70] sm:$0xff]
    %v109 = vld [vmem:[#allocation5 + $0x78] sm:$0xff]
    %v110 = vld [vmem:[#allocation7] sm:$0xff]
    %v111 = vld [vmem:[#allocation7 + $0x8] sm:$0xff]
    %v112 = vld [vmem:[#allocation7 + $0x10] sm:$0xff]
    %v113 = vld [vmem:[#allocation7 + $0x18] sm:$0xff]
    %v114 = vld [vmem:[#allocation7 + $0x20] sm:$0xff]
    %v115 = vld [vmem:[#allocation7 + $0x28] sm:$0xff]
    %v116 = vld [vmem:[#allocation7 + $0x30] sm:$0xff]
    %v117 = vld [vmem:[#allocation7 + $0x38] sm:$0xff]
    %v118 = vld [vmem:[#allocation7 + $0x40] sm:$0xff]
    %v119 = vld [vmem:[#allocation7 + $0x48] sm:$0xff]
    %v120 = vld [vmem:[#allocation7 + $0x50] sm:$0xff]
    %v121 = vld [vmem:[#allocation7 + $0x58] sm:$0xff]
    %v122 = vld [vmem:[#allocation7 + $0x60] sm:$0xff]
    %v123 = vld [vmem:[#allocation7 + $0x68] sm:$0xff]
    %v124 = vld [vmem:[#allocation7 + $0x70] sm:$0xff]
    %v125 = vld [vmem:[#allocation7 + $0x78] sm:$0xff]
    %v126 = vld [vmem:[#allocation10] sm:$0xff]
    %v127 = vld [vmem:[#allocation10 + $0x8] sm:$0xff]
    %v128 = vld [vmem:[#allocation10 + $0x10] sm:$0xff]
    %v129 = vld [vmem:[#allocation10 + $0x18] sm:$0xff]
    %v130 = vld [vmem:[#allocation10 + $0x20] sm:$0xff]
    %v131 = vld [vmem:[#allocation10 + $0x28] sm:$0xff]
    %v132 = vld [vmem:[#allocation10 + $0x30] sm:$0xff]
    %v133 = vld [vmem:[#allocation10 + $0x38] sm:$0xff]
    %v134 = vld [vmem:[#allocation10 + $0x40] sm:$0xff]
    %v135 = vld [vmem:[#allocation10 + $0x48] sm:$0xff]
    %v136 = vld [vmem:[#allocation10 + $0x50] sm:$0xff]
    %v137 = vld [vmem:[#allocation10 + $0x58] sm:$0xff]
    %v138 = vld [vmem:[#allocation10 + $0x60] sm:$0xff]
    %v139 = vld [vmem:[#allocation10 + $0x68] sm:$0xff]
    %v140 = vld [vmem:[#allocation10 + $0x70] sm:$0xff]
    %v141 = vld [vmem:[#allocation10 + $0x78] sm:$0xff]
    %v142 = vmul.f32 %v110, %v126
    %v143 = vmul.f32 %v111, %v127
    %v144 = vmul.f32 %v112, %v128
    %v145 = vmul.f32 %v113, %v129
    %v146 = vmul.f32 %v114, %v130
    %v147 = vmul.f32 %v115, %v131
    %v148 = vmul.f32 %v116, %v132
    %v149 = vmul.f32 %v117, %v133
    %v150 = vmul.f32 %v118, %v134
    %v151 = vmul.f32 %v119, %v135
    %v152 = vmul.f32 %v120, %v136
    %v153 = vmul.f32 %v121, %v137
    %v154 = vmul.f32 %v122, %v138
    %v155 = vmul.f32 %v123, %v139
    %v156 = vmul.f32 %v124, %v140
    %v157 = vmul.f32 %v125, %v141
    %v158 = vadd.f32 %v94, %v142
    %v159 = vadd.f32 %v95, %v143
    %v160 = vadd.f32 %v96, %v144
    %v161 = vadd.f32 %v97, %v145
    %v162 = vadd.f32 %v98, %v146
    %v163 = vadd.f32 %v99, %v147
    %v164 = vadd.f32 %v100, %v148
    %v165 = vadd.f32 %v101, %v149
    %v166 = vadd.f32 %v102, %v150
    %v167 = vadd.f32 %v103, %v151
    %v168 = vadd.f32 %v104, %v152
    %v169 = vadd.f32 %v105, %v153
    %v170 = vadd.f32 %v106, %v154
    %v171 = vadd.f32 %v107, %v155
    %v172 = vadd.f32 %v108, %v156
    %v173 = vadd.f32 %v109, %v157
    %v174 = vld [vmem:[%s3] sm:$0x1]
    %v175 = vld [vmem:[#allocation8] sm:$0x1]
    %v176 = vld [vmem:[%s6] sm:$0x1]
    %v177 = vmul.f32 %v175, %v176
    %v178 = vadd.f32 %v174, %v177
    %v180 = vlaneseq
    %v181 = vshrl.u32 %v180, 7
    %v182 = vsub.s32 0, %v181
    %v183 = vrot.slane %v178, %v182
    %185 = vmatprep.subr.mxu0 0.0
    %186 = vmatpush1.msra.mxu0 %v173
    %187 = vmatprep.subr.mxu0 0.0
    %188 = vmatpush1.msra.mxu0 %v172
    %189 = vmatprep.subr.mxu0 0.0
    %190 = vmatpush1.msra.mxu0 %v171
    %191 = vmatprep.subr.mxu0 0.0
    %192 = vmatpush1.msra.mxu0 %v170
    %193 = vmatprep.subr.mxu0 0.0
    %194 = vmatpush1.msra.mxu0 %v169
    %195 = vmatprep.subr.mxu0 0.0
    %196 = vmatpush1.msra.mxu0 %v168
    %197 = vmatprep.subr.mxu0 0.0
    %198 = vmatpush1.msra.mxu0 %v167
    %199 = vmatprep.subr.mxu0 0.0
    %200 = vmatpush1.msra.mxu0 %v166
    %201 = vmatprep.subr.mxu0 0.0
    %202 = vmatpush1.msra.mxu0 %v165
    %203 = vmatprep.subr.mxu0 0.0
    %204 = vmatpush1.msra.mxu0 %v164
    %205 = vmatprep.subr.mxu0 0.0
    %206 = vmatpush1.msra.mxu0 %v163
    %207 = vmatprep.subr.mxu0 0.0
    %208 = vmatpush1.msra.mxu0 %v162
    %209 = vmatprep.subr.mxu0 0.0
    %210 = vmatpush1.msra.mxu0 %v161
    %211 = vmatprep.subr.mxu0 0.0
    %212 = vmatpush1.msra.mxu0 %v160
    %213 = vmatprep.subr.mxu0 0.0
    %214 = vmatpush1.msra.mxu0 %v159
    %215 = vmatprep.subr.mxu0 0.0
    %216 = vmatpush1.msra.mxu0 %v158
    %217 = vmatprep.subr.mxu0 0.0
    %218 = vmatpush2.msra.mxu0 0.0
    %219 = vmatprep.subr.mxu0 0.0
    %220 = vmatpush2.msra.mxu0 0.0
    %221 = vmatprep.subr.mxu0 0.0
    %222 = vmatpush2.msra.mxu0 0.0
    %223 = vmatprep.subr.mxu0 0.0
    %224 = vmatpush2.msra.mxu0 0.0
    %225 = vmatprep.subr.mxu0 0.0
    %226 = vmatpush2.msra.mxu0 0.0
    %227 = vmatprep.subr.mxu0 0.0
    %228 = vmatpush2.msra.mxu0 0.0
    %229 = vmatprep.subr.mxu0 0.0
    %230 = vmatpush2.msra.mxu0 0.0
    %231 = vmatprep.subr.mxu0 0.0
    %232 = vmatpush2.msra.mxu0 0.0
    %233 = vmatprep.subr.mxu0 0.0
    %234 = vmatpush2.msra.mxu0 0.0
    %235 = vmatprep.subr.mxu0 0.0
    %236 = vmatpush2.msra.mxu0 0.0
    %237 = vmatprep.subr.mxu0 0.0
    %238 = vmatpush2.msra.mxu0 0.0
    %239 = vmatprep.subr.mxu0 0.0
    %240 = vmatpush2.msra.mxu0 0.0
    %241 = vmatprep.subr.mxu0 0.0
    %242 = vmatpush2.msra.mxu0 0.0
    %243 = vmatprep.subr.mxu0 0.0
    %244 = vmatpush2.msra.mxu0 0.0
    %245 = vmatprep.subr.mxu0 0.0
    %246 = vmatpush2.msra.mxu0 0.0
    %247 = vmatprep.subr.mxu0 0.0
    %248 = vmatpush2.msra.mxu0 0.0
    %249 = vmatprep.mubr.f32.mxu0 0.0
    %250 = vmatmul.mubr.f32.gmra.mxu0 %v93
    %v251 = vpop.f32.mrf.mxu0
    %v252 = vadd.f32 %v183, %v251
    %v253 = vpop.f32.mrf.mxu0
    %254 = vdwg.mxu0
    %v255 = vtanh.pop %v252
    %s256 = scalar_lea.vmem [#allocation5], 128
    %v257 = vld [vmem:[%s256] sm:$0xff]
    %v258 = vld [vmem:[%s256 + $0x8] sm:$0xff]
    %v259 = vld [vmem:[%s256 + $0x10] sm:$0xff]
    %v260 = vld [vmem:[%s256 + $0x18] sm:$0xff]
    %v261 = vld [vmem:[%s256 + $0x20] sm:$0xff]
    %v262 = vld [vmem:[%s256 + $0x28] sm:$0xff]
    %v263 = vld [vmem:[%s256 + $0x30] sm:$0xff]
    %v264 = vld [vmem:[%s256 + $0x38] sm:$0xff]
    %v265 = vld [vmem:[%s256 + $0x40] sm:$0xff]
    %v266 = vld [vmem:[%s256 + $0x48] sm:$0xff]
    %v267 = vld [vmem:[%s256 + $0x50] sm:$0xff]
    %v268 = vld [vmem:[%s256 + $0x58] sm:$0xff]
    %v269 = vld [vmem:[%s256 + $0x60] sm:$0xff]
    %v270 = vld [vmem:[%s256 + $0x68] sm:$0xff]
    %v271 = vld [vmem:[%s256 + $0x70] sm:$0xff]
    %v272 = vld [vmem:[%s256 + $0x78] sm:$0xff]
    %s273 = scalar_lea.vmem [#allocation7], 128
    %v274 = vld [vmem:[%s273] sm:$0xff]
    %v275 = vld [vmem:[%s273 + $0x8] sm:$0xff]
    %v276 = vld [vmem:[%s273 + $0x10] sm:$0xff]
    %v277 = vld [vmem:[%s273 + $0x18] sm:$0xff]
    %v278 = vld [vmem:[%s273 + $0x20] sm:$0xff]
    %v279 = vld [vmem:[%s273 + $0x28] sm:$0xff]
    %v280 = vld [vmem:[%s273 + $0x30] sm:$0xff]
    %v281 = vld [vmem:[%s273 + $0x38] sm:$0xff]
    %v282 = vld [vmem:[%s273 + $0x40] sm:$0xff]
    %v283 = vld [vmem:[%s273 + $0x48] sm:$0xff]
    %v284 = vld [vmem:[%s273 + $0x50] sm:$0xff]
    %v285 = vld [vmem:[%s273 + $0x58] sm:$0xff]
    %v286 = vld [vmem:[%s273 + $0x60] sm:$0xff]
    %v287 = vld [vmem:[%s273 + $0x68] sm:$0xff]
    %v288 = vld [vmem:[%s273 + $0x70] sm:$0xff]
    %v289 = vld [vmem:[%s273 + $0x78] sm:$0xff]
    %s290 = scalar_lea.vmem [#allocation10], 128
    %v291 = vld [vmem:[%s290] sm:$0xff]
    %v292 = vld [vmem:[%s290 + $0x8] sm:$0xff]
    %v293 = vld [vmem:[%s290 + $0x10] sm:$0xff]
    %v294 = vld [vmem:[%s290 + $0x18] sm:$0xff]
    %v295 = vld [vmem:[%s290 + $0x20] sm:$0xff]
    %v296 = vld [vmem:[%s290 + $0x28] sm:$0xff]
    %v297 = vld [vmem:[%s290 + $0x30] sm:$0xff]
    %v298 = vld [vmem:[%s290 + $0x38] sm:$0xff]
    %v299 = vld [vmem:[%s290 + $0x40] sm:$0xff]
    %v300 = vld [vmem:[%s290 + $0x48] sm:$0xff]
    %v301 = vld [vmem:[%s290 + $0x50] sm:$0xff]
    %v302 = vld [vmem:[%s290 + $0x58] sm:$0xff]
    %v303 = vld [vmem:[%s290 + $0x60] sm:$0xff]
    %v304 = vld [vmem:[%s290 + $0x68] sm:$0xff]
    %v305 = vld [vmem:[%s290 + $0x70] sm:$0xff]
    %v306 = vld [vmem:[%s290 + $0x78] sm:$0xff]
    %v307 = vmul.f32 %v274, %v291
    %v308 = vmul.f32 %v275, %v292
    %v309 = vmul.f32 %v276, %v293
    %v310 = vmul.f32 %v277, %v294
    %v311 = vmul.f32 %v278, %v295
    %v312 = vmul.f32 %v279, %v296
    %v313 = vmul.f32 %v280, %v297
    %v314 = vmul.f32 %v281, %v298
    %v315 = vmul.f32 %v282, %v299
    %v316 = vmul.f32 %v283, %v300
    %v317 = vmul.f32 %v284, %v301
    %v318 = vmul.f32 %v285, %v302
    %v319 = vmul.f32 %v286, %v303
    %v320 = vmul.f32 %v287, %v304
    %v321 = vmul.f32 %v288, %v305
    %v322 = vmul.f32 %v289, %v306
    %v323 = vadd.f32 %v257, %v307
    %v324 = vadd.f32 %v258, %v308
    %v325 = vadd.f32 %v259, %v309
    %v326 = vadd.f32 %v260, %v310
    %v327 = vadd.f32 %v261, %v311
    %v328 = vadd.f32 %v262, %v312
    %v329 = vadd.f32 %v263, %v313
    %v330 = vadd.f32 %v264, %v314
    %v331 = vadd.f32 %v265, %v315
    %v332 = vadd.f32 %v266, %v316
    %v333 = vadd.f32 %v267, %v317
    %v334 = vadd.f32 %v268, %v318
    %v335 = vadd.f32 %v269, %v319
    %v336 = vadd.f32 %v270, %v320
    %v337 = vadd.f32 %v271, %v321
    %v338 = vadd.f32 %v272, %v322
    %s339 = scalar_lea.vmem %s3, 1
    %v340 = vld [vmem:[%s339] sm:$0x1]
    %s341 = scalar_lea.vmem [#allocation8], 1
    %v342 = vld [vmem:[%s341] sm:$0x1]
    %s343 = scalar_lea.vmem %s6, 1
    %v344 = vld [vmem:[%s343] sm:$0x1]
    %v345 = vmul.f32 %v342, %v344
    %v346 = vadd.f32 %v340, %v345
    %v348 = vlaneseq
    %v349 = vshrl.u32 %v348, 7
    %v350 = vsub.s32 0, %v349
    %v351 = vrot.slane %v346, %v350
    %353 = vmatprep.subr.mxu0 0.0
    %354 = vmatpush1.msra.mxu0 %v338
    %355 = vmatprep.subr.mxu0 0.0
    %356 = vmatpush1.msra.mxu0 %v337
    %357 = vmatprep.subr.mxu0 0.0
    %358 = vmatpush1.msra.mxu0 %v336
    %359 = vmatprep.subr.mxu0 0.0
    %360 = vmatpush1.msra.mxu0 %v335
    %361 = vmatprep.subr.mxu0 0.0
    %362 = vmatpush1.msra.mxu0 %v334
    %363 = vmatprep.subr.mxu0 0.0
    %364 = vmatpush1.msra.mxu0 %v333
    %365 = vmatprep.subr.mxu0 0.0
    %366 = vmatpush1.msra.mxu0 %v332
    %367 = vmatprep.subr.mxu0 0.0
    %368 = vmatpush1.msra.mxu0 %v331
    %369 = vmatprep.subr.mxu0 0.0
    %370 = vmatpush1.msra.mxu0 %v330
    %371 = vmatprep.subr.mxu0 0.0
    %372 = vmatpush1.msra.mxu0 %v329
    %373 = vmatprep.subr.mxu0 0.0
    %374 = vmatpush1.msra.mxu0 %v328
    %375 = vmatprep.subr.mxu0 0.0
    %376 = vmatpush1.msra.mxu0 %v327
    %377 = vmatprep.subr.mxu0 0.0
    %378 = vmatpush1.msra.mxu0 %v326
    %379 = vmatprep.subr.mxu0 0.0
    %380 = vmatpush1.msra.mxu0 %v325
    %381 = vmatprep.subr.mxu0 0.0
    %382 = vmatpush1.msra.mxu0 %v324
    %383 = vmatprep.subr.mxu0 0.0
    %384 = vmatpush1.msra.mxu0 %v323
    %385 = vmatprep.subr.mxu0 0.0
    %386 = vmatpush2.msra.mxu0 0.0
    %387 = vmatprep.subr.mxu0 0.0
    %388 = vmatpush2.msra.mxu0 0.0
    %389 = vmatprep.subr.mxu0 0.0
    %390 = vmatpush2.msra.mxu0 0.0
    %391 = vmatprep.subr.mxu0 0.0
    %392 = vmatpush2.msra.mxu0 0.0
    %393 = vmatprep.subr.mxu0 0.0
    %394 = vmatpush2.msra.mxu0 0.0
    %395 = vmatprep.subr.mxu0 0.0
    %396 = vmatpush2.msra.mxu0 0.0
    %397 = vmatprep.subr.mxu0 0.0
    %398 = vmatpush2.msra.mxu0 0.0
    %399 = vmatprep.subr.mxu0 0.0
    %400 = vmatpush2.msra.mxu0 0.0
    %401 = vmatprep.subr.mxu0 0.0
    %402 = vmatpush2.msra.mxu0 0.0
    %403 = vmatprep.subr.mxu0 0.0
    %404 = vmatpush2.msra.mxu0 0.0
    %405 = vmatprep.subr.mxu0 0.0
    %406 = vmatpush2.msra.mxu0 0.0
    %407 = vmatprep.subr.mxu0 0.0
    %408 = vmatpush2.msra.mxu0 0.0
    %409 = vmatprep.subr.mxu0 0.0
    %410 = vmatpush2.msra.mxu0 0.0
    %411 = vmatprep.subr.mxu0 0.0
    %412 = vmatpush2.msra.mxu0 0.0
    %413 = vmatprep.subr.mxu0 0.0
    %414 = vmatpush2.msra.mxu0 0.0
    %415 = vmatprep.subr.mxu0 0.0
    %416 = vmatpush2.msra.mxu0 0.0
    %417 = vmatprep.mubr.f32.mxu0 0.0
    %418 = vmatmul.mubr.f32.gmra.mxu0 %v255
    %v419 = vpop.f32.mrf.mxu0
    %v420 = vadd.f32 %v351, %v419
    %v421 = vpop.f32.mrf.mxu0
    %422 = vdwg.mxu0
    %v423 = vtanh.pop %v420
    %s424 = scalar_lea.vmem [#allocation5], 256
    %v425 = vld [vmem:[%s424] sm:$0xff]
    %v426 = vld [vmem:[%s424 + $0x8] sm:$0xff]
    %v427 = vld [vmem:[%s424 + $0x10] sm:$0xff]
    %v428 = vld [vmem:[%s424 + $0x18] sm:$0xff]
    %v429 = vld [vmem:[%s424 + $0x20] sm:$0xff]
    %v430 = vld [vmem:[%s424 + $0x28] sm:$0xff]
    %v431 = vld [vmem:[%s424 + $0x30] sm:$0xff]
    %v432 = vld [vmem:[%s424 + $0x38] sm:$0xff]
    %v433 = vld [vmem:[%s424 + $0x40] sm:$0xff]
    %v434 = vld [vmem:[%s424 + $0x48] sm:$0xff]
    %v435 = vld [vmem:[%s424 + $0x50] sm:$0xff]
    %v436 = vld [vmem:[%s424 + $0x58] sm:$0xff]
    %v437 = vld [vmem:[%s424 + $0x60] sm:$0xff]
    %v438 = vld [vmem:[%s424 + $0x68] sm:$0xff]
    %v439 = vld [vmem:[%s424 + $0x70] sm:$0xff]
    %v440 = vld [vmem:[%s424 + $0x78] sm:$0xff]
    %s441 = scalar_lea.vmem [#allocation7], 256
    %v442 = vld [vmem:[%s441] sm:$0xff]
    %v443 = vld [vmem:[%s441 + $0x8] sm:$0xff]
    %v444 = vld [vmem:[%s441 + $0x10] sm:$0xff]
    %v445 = vld [vmem:[%s441 + $0x18] sm:$0xff]
    %v446 = vld [vmem:[%s441 + $0x20] sm:$0xff]
    %v447 = vld [vmem:[%s441 + $0x28] sm:$0xff]
    %v448 = vld [vmem:[%s441 + $0x30] sm:$0xff]
    %v449 = vld [vmem:[%s441 + $0x38] sm:$0xff]
    %v450 = vld [vmem:[%s441 + $0x40] sm:$0xff]
    %v451 = vld [vmem:[%s441 + $0x48] sm:$0xff]
    %v452 = vld [vmem:[%s441 + $0x50] sm:$0xff]
    %v453 = vld [vmem:[%s441 + $0x58] sm:$0xff]
    %v454 = vld [vmem:[%s441 + $0x60] sm:$0xff]
    %v455 = vld [vmem:[%s441 + $0x68] sm:$0xff]
    %v456 = vld [vmem:[%s441 + $0x70] sm:$0xff]
    %v457 = vld [vmem:[%s441 + $0x78] sm:$0xff]
    %s458 = scalar_lea.vmem [#allocation10], 256
    %v459 = vld [vmem:[%s458] sm:$0xff]
    %v460 = vld [vmem:[%s458 + $0x8] sm:$0xff]
    %v461 = vld [vmem:[%s458 + $0x10] sm:$0xff]
    %v462 = vld [vmem:[%s458 + $0x18] sm:$0xff]
    %v463 = vld [vmem:[%s458 + $0x20] sm:$0xff]
    %v464 = vld [vmem:[%s458 + $0x28] sm:$0xff]
    %v465 = vld [vmem:[%s458 + $0x30] sm:$0xff]
    %v466 = vld [vmem:[%s458 + $0x38] sm:$0xff]
    %v467 = vld [vmem:[%s458 + $0x40] sm:$0xff]
    %v468 = vld [vmem:[%s458 + $0x48] sm:$0xff]
    %v469 = vld [vmem:[%s458 + $0x50] sm:$0xff]
    %v470 = vld [vmem:[%s458 + $0x58] sm:$0xff]
    %v471 = vld [vmem:[%s458 + $0x60] sm:$0xff]
    %v472 = vld [vmem:[%s458 + $0x68] sm:$0xff]
    %v473 = vld [vmem:[%s458 + $0x70] sm:$0xff]
    %v474 = vld [vmem:[%s458 + $0x78] sm:$0xff]
    %v475 = vmul.f32 %v442, %v459
    %v476 = vmul.f32 %v443, %v460
    %v477 = vmul.f32 %v444, %v461
    %v478 = vmul.f32 %v445, %v462
    %v479 = vmul.f32 %v446, %v463
    %v480 = vmul.f32 %v447, %v464
    %v481 = vmul.f32 %v448, %v465
    %v482 = vmul.f32 %v449, %v466
    %v483 = vmul.f32 %v450, %v467
    %v484 = vmul.f32 %v451, %v468
    %v485 = vmul.f32 %v452, %v469
    %v486 = vmul.f32 %v453, %v470
    %v487 = vmul.f32 %v454, %v471
    %v488 = vmul.f32 %v455, %v472
    %v489 = vmul.f32 %v456, %v473
    %v490 = vmul.f32 %v457, %v474
    %v491 = vadd.f32 %v425, %v475
    %v492 = vadd.f32 %v426, %v476
    %v493 = vadd.f32 %v427, %v477
    %v494 = vadd.f32 %v428, %v478
    %v495 = vadd.f32 %v429, %v479
    %v496 = vadd.f32 %v430, %v480
    %v497 = vadd.f32 %v431, %v481
    %v498 = vadd.f32 %v432, %v482
    %v499 = vadd.f32 %v433, %v483
    %v500 = vadd.f32 %v434, %v484
    %v501 = vadd.f32 %v435, %v485
    %v502 = vadd.f32 %v436, %v486
    %v503 = vadd.f32 %v437, %v487
    %v504 = vadd.f32 %v438, %v488
    %v505 = vadd.f32 %v439, %v489
    %v506 = vadd.f32 %v440, %v490
    %s507 = scalar_lea.vmem %s3, 2
    %v508 = vld [vmem:[%s507] sm:$0x1]
    %s509 = scalar_lea.vmem [#allocation8], 2
    %v510 = vld [vmem:[%s509] sm:$0x1]
    %s511 = scalar_lea.vmem %s6, 2
    %v512 = vld [vmem:[%s511] sm:$0x1]
    %v513 = vmul.f32 %v510, %v512
    %v514 = vadd.f32 %v508, %v513
    %v516 = vlaneseq
    %v517 = vshrl.u32 %v516, 7
    %v518 = vsub.s32 0, %v517
    %v519 = vrot.slane %v514, %v518
    %521 = vmatprep.subr.mxu0 0.0
    %522 = vmatpush1.msra.mxu0 %v506
    %523 = vmatprep.subr.mxu0 0.0
    %524 = vmatpush1.msra.mxu0 %v505
    %525 = vmatprep.subr.mxu0 0.0
    %526 = vmatpush1.msra.mxu0 %v504
    %527 = vmatprep.subr.mxu0 0.0
    %528 = vmatpush1.msra.mxu0 %v503
    %529 = vmatprep.subr.mxu0 0.0
    %530 = vmatpush1.msra.mxu0 %v502
    %531 = vmatprep.subr.mxu0 0.0
    %532 = vmatpush1.msra.mxu0 %v501
    %533 = vmatprep.subr.mxu0 0.0
    %534 = vmatpush1.msra.mxu0 %v500
    %535 = vmatprep.subr.mxu0 0.0
    %536 = vmatpush1.msra.mxu0 %v499
    %537 = vmatprep.subr.mxu0 0.0
    %538 = vmatpush1.msra.mxu0 %v498
    %539 = vmatprep.subr.mxu0 0.0
    %540 = vmatpush1.msra.mxu0 %v497
    %541 = vmatprep.subr.mxu0 0.0
    %542 = vmatpush1.msra.mxu0 %v496
    %543 = vmatprep.subr.mxu0 0.0
    %544 = vmatpush1.msra.mxu0 %v495
    %545 = vmatprep.subr.mxu0 0.0
    %546 = vmatpush1.msra.mxu0 %v494
    %547 = vmatprep.subr.mxu0 0.0
    %548 = vmatpush1.msra.mxu0 %v493
    %549 = vmatprep.subr.mxu0 0.0
    %550 = vmatpush1.msra.mxu0 %v492
    %551 = vmatprep.subr.mxu0 0.0
    %552 = vmatpush1.msra.mxu0 %v491
    %553 = vmatprep.subr.mxu0 0.0
    %554 = vmatpush2.msra.mxu0 0.0
    %555 = vmatprep.subr.mxu0 0.0
    %556 = vmatpush2.msra.mxu0 0.0
    %557 = vmatprep.subr.mxu0 0.0
    %558 = vmatpush2.msra.mxu0 0.0
    %559 = vmatprep.subr.mxu0 0.0
    %560 = vmatpush2.msra.mxu0 0.0
    %561 = vmatprep.subr.mxu0 0.0
    %562 = vmatpush2.msra.mxu0 0.0
    %563 = vmatprep.subr.mxu0 0.0
    %564 = vmatpush2.msra.mxu0 0.0
    %565 = vmatprep.subr.mxu0 0.0
    %566 = vmatpush2.msra.mxu0 0.0
    %567 = vmatprep.subr.mxu0 0.0
    %568 = vmatpush2.msra.mxu0 0.0
    %569 = vmatprep.subr.mxu0 0.0
    %570 = vmatpush2.msra.mxu0 0.0
    %571 = vmatprep.subr.mxu0 0.0
    %572 = vmatpush2.msra.mxu0 0.0
    %573 = vmatprep.subr.mxu0 0.0
    %574 = vmatpush2.msra.mxu0 0.0
    %575 = vmatprep.subr.mxu0 0.0
    %576 = vmatpush2.msra.mxu0 0.0
    %577 = vmatprep.subr.mxu0 0.0
    %578 = vmatpush2.msra.mxu0 0.0
    %579 = vmatprep.subr.mxu0 0.0
    %580 = vmatpush2.msra.mxu0 0.0
    %581 = vmatprep.subr.mxu0 0.0
    %582 = vmatpush2.msra.mxu0 0.0
    %583 = vmatprep.subr.mxu0 0.0
    %584 = vmatpush2.msra.mxu0 0.0
    %585 = vmatprep.mubr.f32.mxu0 0.0
    %586 = vmatmul.mubr.f32.gmra.mxu0 %v423
    %v587 = vpop.f32.mrf.mxu0
    %v588 = vadd.f32 %v519, %v587
    %v589 = vpop.f32.mrf.mxu0
    %590 = vdwg.mxu0
    %591 = vst [vmem:[#allocation11] sm:$0xff] %v588
    %v592 = vld [vmem:[#allocation5] sm:$0xff]
    %v593 = vld [vmem:[#allocation5 + $0x8] sm:$0xff]
    %v594 = vld [vmem:[#allocation5 + $0x10] sm:$0xff]
    %v595 = vld [vmem:[#allocation5 + $0x18] sm:$0xff]
    %v596 = vld [vmem:[#allocation5 + $0x20] sm:$0xff]
    %v597 = vld [vmem:[#allocation5 + $0x28] sm:$0xff]
    %v598 = vld [vmem:[#allocation5 + $0x30] sm:$0xff]
    %v599 = vld [vmem:[#allocation5 + $0x38] sm:$0xff]
    %v600 = vld [vmem:[#allocation5 + $0x40] sm:$0xff]
    %v601 = vld [vmem:[#allocation5 + $0x48] sm:$0xff]
    %v602 = vld [vmem:[#allocation5 + $0x50] sm:$0xff]
    %v603 = vld [vmem:[#allocation5 + $0x58] sm:$0xff]
    %v604 = vld [vmem:[#allocation5 + $0x60] sm:$0xff]
    %v605 = vld [vmem:[#allocation5 + $0x68] sm:$0xff]
    %v606 = vld [vmem:[#allocation5 + $0x70] sm:$0xff]
    %v607 = vld [vmem:[#allocation5 + $0x78] sm:$0xff]
    %v608 = vld [vmem:[#allocation7] sm:$0xff]
    %v609 = vld [vmem:[#allocation7 + $0x8] sm:$0xff]
    %v610 = vld [vmem:[#allocation7 + $0x10] sm:$0xff]
    %v611 = vld [vmem:[#allocation7 + $0x18] sm:$0xff]
    %v612 = vld [vmem:[#allocation7 + $0x20] sm:$0xff]
    %v613 = vld [vmem:[#allocation7 + $0x28] sm:$0xff]
    %v614 = vld [vmem:[#allocation7 + $0x30] sm:$0xff]
    %v615 = vld [vmem:[#allocation7 + $0x38] sm:$0xff]
    %v616 = vld [vmem:[#allocation7 + $0x40] sm:$0xff]
    %v617 = vld [vmem:[#allocation7 + $0x48] sm:$0xff]
    %v618 = vld [vmem:[#allocation7 + $0x50] sm:$0xff]
    %v619 = vld [vmem:[#allocation7 + $0x58] sm:$0xff]
    %v620 = vld [vmem:[#allocation7 + $0x60] sm:$0xff]
    %v621 = vld [vmem:[#allocation7 + $0x68] sm:$0xff]
    %v622 = vld [vmem:[#allocation7 + $0x70] sm:$0xff]
    %v623 = vld [vmem:[#allocation7 + $0x78] sm:$0xff]
    %s624 = scalar_lea.vmem [#allocation10], 384
    %v625 = vld [vmem:[%s624] sm:$0xff]
    %v626 = vld [vmem:[%s624 + $0x8] sm:$0xff]
    %v627 = vld [vmem:[%s624 + $0x10] sm:$0xff]
    %v628 = vld [vmem:[%s624 + $0x18] sm:$0xff]
    %v629 = vld [vmem:[%s624 + $0x20] sm:$0xff]
    %v630 = vld [vmem:[%s624 + $0x28] sm:$0xff]
    %v631 = vld [vmem:[%s624 + $0x30] sm:$0xff]
    %v632 = vld [vmem:[%s624 + $0x38] sm:$0xff]
    %v633 = vld [vmem:[%s624 + $0x40] sm:$0xff]
    %v634 = vld [vmem:[%s624 + $0x48] sm:$0xff]
    %v635 = vld [vmem:[%s624 + $0x50] sm:$0xff]
    %v636 = vld [vmem:[%s624 + $0x58] sm:$0xff]
    %v637 = vld [vmem:[%s624 + $0x60] sm:$0xff]
    %v638 = vld [vmem:[%s624 + $0x68] sm:$0xff]
    %v639 = vld [vmem:[%s624 + $0x70] sm:$0xff]
    %v640 = vld [vmem:[%s624 + $0x78] sm:$0xff]
    %v641 = vmul.f32 %v608, %v625
    %v642 = vmul.f32 %v609, %v626
    %v643 = vmul.f32 %v610, %v627
    %v644 = vmul.f32 %v611, %v628
    %v645 = vmul.f32 %v612, %v629
    %v646 = vmul.f32 %v613, %v630
    %v647 = vmul.f32 %v614, %v631
    %v648 = vmul.f32 %v615, %v632
    %v649 = vmul.f32 %v616, %v633
    %v650 = vmul.f32 %v617, %v634
    %v651 = vmul.f32 %v618, %v635
    %v652 = vmul.f32 %v619, %v636
    %v653 = vmul.f32 %v620, %v637
    %v654 = vmul.f32 %v621, %v638
    %v655 = vmul.f32 %v622, %v639
    %v656 = vmul.f32 %v623, %v640
    %v657 = vadd.f32 %v592, %v641
    %v658 = vadd.f32 %v593, %v642
    %v659 = vadd.f32 %v594, %v643
    %v660 = vadd.f32 %v595, %v644
    %v661 = vadd.f32 %v596, %v645
    %v662 = vadd.f32 %v597, %v646
    %v663 = vadd.f32 %v598, %v647
    %v664 = vadd.f32 %v599, %v648
    %v665 = vadd.f32 %v600, %v649
    %v666 = vadd.f32 %v601, %v650
    %v667 = vadd.f32 %v602, %v651
    %v668 = vadd.f32 %v603, %v652
    %v669 = vadd.f32 %v604, %v653
    %v670 = vadd.f32 %v605, %v654
    %v671 = vadd.f32 %v606, %v655
    %v672 = vadd.f32 %v607, %v656
    %v673 = vld [vmem:[%s3] sm:$0x1]
    %v674 = vld [vmem:[#allocation8] sm:$0x1]
    %s675 = scalar_lea.vmem %s6, 3
    %v676 = vld [vmem:[%s675] sm:$0x1]
    %v677 = vmul.f32 %v674, %v676
    %v678 = vadd.f32 %v673, %v677
    %v680 = vlaneseq
    %v681 = vshrl.u32 %v680, 7
    %v682 = vsub.s32 0, %v681
    %v683 = vrot.slane %v678, %v682
    %685 = vmatprep.subr.mxu0 0.0
    %686 = vmatpush1.msra.mxu0 %v672
    %687 = vmatprep.subr.mxu0 0.0
    %688 = vmatpush1.msra.mxu0 %v671
    %689 = vmatprep.subr.mxu0 0.0
    %690 = vmatpush1.msra.mxu0 %v670
    %691 = vmatprep.subr.mxu0 0.0
    %692 = vmatpush1.msra.mxu0 %v669
    %693 = vmatprep.subr.mxu0 0.0
    %694 = vmatpush1.msra.mxu0 %v668
    %695 = vmatprep.subr.mxu0 0.0
    %696 = vmatpush1.msra.mxu0 %v667
    %697 = vmatprep.subr.mxu0 0.0
    %698 = vmatpush1.msra.mxu0 %v666
    %699 = vmatprep.subr.mxu0 0.0
    %700 = vmatpush1.msra.mxu0 %v665
    %701 = vmatprep.subr.mxu0 0.0
    %702 = vmatpush1.msra.mxu0 %v664
    %703 = vmatprep.subr.mxu0 0.0
    %704 = vmatpush1.msra.mxu0 %v663
    %705 = vmatprep.subr.mxu0 0.0
    %706 = vmatpush1.msra.mxu0 %v662
    %707 = vmatprep.subr.mxu0 0.0
    %708 = vmatpush1.msra.mxu0 %v661
    %709 = vmatprep.subr.mxu0 0.0
    %710 = vmatpush1.msra.mxu0 %v660
    %711 = vmatprep.subr.mxu0 0.0
    %712 = vmatpush1.msra.mxu0 %v659
    %713 = vmatprep.subr.mxu0 0.0
    %714 = vmatpush1.msra.mxu0 %v658
    %715 = vmatprep.subr.mxu0 0.0
    %716 = vmatpush1.msra.mxu0 %v657
    %717 = vmatprep.subr.mxu0 0.0
    %718 = vmatpush2.msra.mxu0 0.0
    %719 = vmatprep.subr.mxu0 0.0
    %720 = vmatpush2.msra.mxu0 0.0
    %721 = vmatprep.subr.mxu0 0.0
    %722 = vmatpush2.msra.mxu0 0.0
    %723 = vmatprep.subr.mxu0 0.0
    %724 = vmatpush2.msra.mxu0 0.0
    %725 = vmatprep.subr.mxu0 0.0
    %726 = vmatpush2.msra.mxu0 0.0
    %727 = vmatprep.subr.mxu0 0.0
    %728 = vmatpush2.msra.mxu0 0.0
    %729 = vmatprep.subr.mxu0 0.0
    %730 = vmatpush2.msra.mxu0 0.0
    %731 = vmatprep.subr.mxu0 0.0
    %732 = vmatpush2.msra.mxu0 0.0
    %733 = vmatprep.subr.mxu0 0.0
    %734 = vmatpush2.msra.mxu0 0.0
    %735 = vmatprep.subr.mxu0 0.0
    %736 = vmatpush2.msra.mxu0 0.0
    %737 = vmatprep.subr.mxu0 0.0
    %738 = vmatpush2.msra.mxu0 0.0
    %739 = vmatprep.subr.mxu0 0.0
    %740 = vmatpush2.msra.mxu0 0.0
    %741 = vmatprep.subr.mxu0 0.0
    %742 = vmatpush2.msra.mxu0 0.0
    %743 = vmatprep.subr.mxu0 0.0
    %744 = vmatpush2.msra.mxu0 0.0
    %745 = vmatprep.subr.mxu0 0.0
    %746 = vmatpush2.msra.mxu0 0.0
    %747 = vmatprep.subr.mxu0 0.0
    %748 = vmatpush2.msra.mxu0 0.0
    %749 = vmatprep.mubr.f32.mxu0 0.0
    %750 = vmatmul.mubr.f32.gmra.mxu0 %v93
    %v751 = vpop.f32.mrf.mxu0
    %v752 = vadd.f32 %v683, %v751
    %v753 = vpop.f32.mrf.mxu0
    %754 = vdwg.mxu0
    %v755 = vtanh.pop %v752
    %v756 = vld [vmem:[%s256] sm:$0xff]
    %v757 = vld [vmem:[%s256 + $0x8] sm:$0xff]
    %v758 = vld [vmem:[%s256 + $0x10] sm:$0xff]
    %v759 = vld [vmem:[%s256 + $0x18] sm:$0xff]
    %v760 = vld [vmem:[%s256 + $0x20] sm:$0xff]
    %v761 = vld [vmem:[%s256 + $0x28] sm:$0xff]
    %v762 = vld [vmem:[%s256 + $0x30] sm:$0xff]
    %v763 = vld [vmem:[%s256 + $0x38] sm:$0xff]
    %v764 = vld [vmem:[%s256 + $0x40] sm:$0xff]
    %v765 = vld [vmem:[%s256 + $0x48] sm:$0xff]
    %v766 = vld [vmem:[%s256 + $0x50] sm:$0xff]
    %v767 = vld [vmem:[%s256 + $0x58] sm:$0xff]
    %v768 = vld [vmem:[%s256 + $0x60] sm:$0xff]
    %v769 = vld [vmem:[%s256 + $0x68] sm:$0xff]
    %v770 = vld [vmem:[%s256 + $0x70] sm:$0xff]
    %v771 = vld [vmem:[%s256 + $0x78] sm:$0xff]
    %v772 = vld [vmem:[%s273] sm:$0xff]
    %v773 = vld [vmem:[%s273 + $0x8] sm:$0xff]
    %v774 = vld [vmem:[%s273 + $0x10] sm:$0xff]
    %v775 = vld [vmem:[%s273 + $0x18] sm:$0xff]
    %v776 = vld [vmem:[%s273 + $0x20] sm:$0xff]
    %v777 = vld [vmem:[%s273 + $0x28] sm:$0xff]
    %v778 = vld [vmem:[%s273 + $0x30] sm:$0xff]
    %v779 = vld [vmem:[%s273 + $0x38] sm:$0xff]
    %v780 = vld [vmem:[%s273 + $0x40] sm:$0xff]
    %v781 = vld [vmem:[%s273 + $0x48] sm:$0xff]
    %v782 = vld [vmem:[%s273 + $0x50] sm:$0xff]
    %v783 = vld [vmem:[%s273 + $0x58] sm:$0xff]
    %v784 = vld [vmem:[%s273 + $0x60] sm:$0xff]
    %v785 = vld [vmem:[%s273 + $0x68] sm:$0xff]
    %v786 = vld [vmem:[%s273 + $0x70] sm:$0xff]
    %v787 = vld [vmem:[%s273 + $0x78] sm:$0xff]
    %s788 = scalar_lea.vmem [#allocation10], 512
    %v789 = vld [vmem:[%s788] sm:$0xff]
    %v790 = vld [vmem:[%s788 + $0x8] sm:$0xff]
    %v791 = vld [vmem:[%s788 + $0x10] sm:$0xff]
    %v792 = vld [vmem:[%s788 + $0x18] sm:$0xff]
    %v793 = vld [vmem:[%s788 + $0x20] sm:$0xff]
    %v794 = vld [vmem:[%s788 + $0x28] sm:$0xff]
    %v795 = vld [vmem:[%s788 + $0x30] sm:$0xff]
    %v796 = vld [vmem:[%s788 + $0x38] sm:$0xff]
    %v797 = vld [vmem:[%s788 + $0x40] sm:$0xff]
    %v798 = vld [vmem:[%s788 + $0x48] sm:$0xff]
    %v799 = vld [vmem:[%s788 + $0x50] sm:$0xff]
    %v800 = vld [vmem:[%s788 + $0x58] sm:$0xff]
    %v801 = vld [vmem:[%s788 + $0x60] sm:$0xff]
    %v802 = vld [vmem:[%s788 + $0x68] sm:$0xff]
    %v803 = vld [vmem:[%s788 + $0x70] sm:$0xff]
    %v804 = vld [vmem:[%s788 + $0x78] sm:$0xff]
    %v805 = vmul.f32 %v772, %v789
    %v806 = vmul.f32 %v773, %v790
    %v807 = vmul.f32 %v774, %v791
    %v808 = vmul.f32 %v775, %v792
    %v809 = vmul.f32 %v776, %v793
    %v810 = vmul.f32 %v777, %v794
    %v811 = vmul.f32 %v778, %v795
    %v812 = vmul.f32 %v779, %v796
    %v813 = vmul.f32 %v780, %v797
    %v814 = vmul.f32 %v781, %v798
    %v815 = vmul.f32 %v782, %v799
    %v816 = vmul.f32 %v783, %v800
    %v817 = vmul.f32 %v784, %v801
    %v818 = vmul.f32 %v785, %v802
    %v819 = vmul.f32 %v786, %v803
    %v820 = vmul.f32 %v787, %v804
    %v821 = vadd.f32 %v756, %v805
    %v822 = vadd.f32 %v757, %v806
    %v823 = vadd.f32 %v758, %v807
    %v824 = vadd.f32 %v759, %v808
    %v825 = vadd.f32 %v760, %v809
    %v826 = vadd.f32 %v761, %v810
    %v827 = vadd.f32 %v762, %v811
    %v828 = vadd.f32 %v763, %v812
    %v829 = vadd.f32 %v764, %v813
    %v830 = vadd.f32 %v765, %v814
    %v831 = vadd.f32 %v766, %v815
    %v832 = vadd.f32 %v767, %v816
    %v833 = vadd.f32 %v768, %v817
    %v834 = vadd.f32 %v769, %v818
    %v835 = vadd.f32 %v770, %v819
    %v836 = vadd.f32 %v771, %v820
    %v837 = vld [vmem:[%s339] sm:$0x1]
    %v838 = vld [vmem:[%s341] sm:$0x1]
    %s839 = scalar_lea.vmem %s6, 4
    %v840 = vld [vmem:[%s839] sm:$0x1]
    %v841 = vmul.f32 %v838, %v840
    %v842 = vadd.f32 %v837, %v841
    %v844 = vlaneseq
    %v845 = vshrl.u32 %v844, 7
    %v846 = vsub.s32 0, %v845
    %v847 = vrot.slane %v842, %v846
    %849 = vmatprep.subr.mxu0 0.0
    %850 = vmatpush1.msra.mxu0 %v836
    %851 = vmatprep.subr.mxu0 0.0
    %852 = vmatpush1.msra.mxu0 %v835
    %853 = vmatprep.subr.mxu0 0.0
    %854 = vmatpush1.msra.mxu0 %v834
    %855 = vmatprep.subr.mxu0 0.0
    %856 = vmatpush1.msra.mxu0 %v833
    %857 = vmatprep.subr.mxu0 0.0
    %858 = vmatpush1.msra.mxu0 %v832
    %859 = vmatprep.subr.mxu0 0.0
    %860 = vmatpush1.msra.mxu0 %v831
    %861 = vmatprep.subr.mxu0 0.0
    %862 = vmatpush1.msra.mxu0 %v830
    %863 = vmatprep.subr.mxu0 0.0
    %864 = vmatpush1.msra.mxu0 %v829
    %865 = vmatprep.subr.mxu0 0.0
    %866 = vmatpush1.msra.mxu0 %v828
    %867 = vmatprep.subr.mxu0 0.0
    %868 = vmatpush1.msra.mxu0 %v827
    %869 = vmatprep.subr.mxu0 0.0
    %870 = vmatpush1.msra.mxu0 %v826
    %871 = vmatprep.subr.mxu0 0.0
    %872 = vmatpush1.msra.mxu0 %v825
    %873 = vmatprep.subr.mxu0 0.0
    %874 = vmatpush1.msra.mxu0 %v824
    %875 = vmatprep.subr.mxu0 0.0
    %876 = vmatpush1.msra.mxu0 %v823
    %877 = vmatprep.subr.mxu0 0.0
    %878 = vmatpush1.msra.mxu0 %v822
    %879 = vmatprep.subr.mxu0 0.0
    %880 = vmatpush1.msra.mxu0 %v821
    %881 = vmatprep.subr.mxu0 0.0
    %882 = vmatpush2.msra.mxu0 0.0
    %883 = vmatprep.subr.mxu0 0.0
    %884 = vmatpush2.msra.mxu0 0.0
    %885 = vmatprep.subr.mxu0 0.0
    %886 = vmatpush2.msra.mxu0 0.0
    %887 = vmatprep.subr.mxu0 0.0
    %888 = vmatpush2.msra.mxu0 0.0
    %889 = vmatprep.subr.mxu0 0.0
    %890 = vmatpush2.msra.mxu0 0.0
    %891 = vmatprep.subr.mxu0 0.0
    %892 = vmatpush2.msra.mxu0 0.0
    %893 = vmatprep.subr.mxu0 0.0
    %894 = vmatpush2.msra.mxu0 0.0
    %895 = vmatprep.subr.mxu0 0.0
    %896 = vmatpush2.msra.mxu0 0.0
    %897 = vmatprep.subr.mxu0 0.0
    %898 = vmatpush2.msra.mxu0 0.0
    %899 = vmatprep.subr.mxu0 0.0
    %900 = vmatpush2.msra.mxu0 0.0
    %901 = vmatprep.subr.mxu0 0.0
    %902 = vmatpush2.msra.mxu0 0.0
    %903 = vmatprep.subr.mxu0 0.0
    %904 = vmatpush2.msra.mxu0 0.0
    %905 = vmatprep.subr.mxu0 0.0
    %906 = vmatpush2.msra.mxu0 0.0
    %907 = vmatprep.subr.mxu0 0.0
    %908 = vmatpush2.msra.mxu0 0.0
    %909 = vmatprep.subr.mxu0 0.0
    %910 = vmatpush2.msra.mxu0 0.0
    %911 = vmatprep.subr.mxu0 0.0
    %912 = vmatpush2.msra.mxu0 0.0
    %913 = vmatprep.mubr.f32.mxu0 0.0
    %914 = vmatmul.mubr.f32.gmra.mxu0 %v755
    %v915 = vpop.f32.mrf.mxu0
    %v916 = vadd.f32 %v847, %v915
    %v917 = vpop.f32.mrf.mxu0
    %918 = vdwg.mxu0
    %v919 = vtanh.pop %v916
    %v920 = vld [vmem:[%s424] sm:$0xff]
    %v921 = vld [vmem:[%s424 + $0x8] sm:$0xff]
    %v922 = vld [vmem:[%s424 + $0x10] sm:$0xff]
    %v923 = vld [vmem:[%s424 + $0x18] sm:$0xff]
    %v924 = vld [vmem:[%s424 + $0x20] sm:$0xff]
    %v925 = vld [vmem:[%s424 + $0x28] sm:$0xff]
    %v926 = vld [vmem:[%s424 + $0x30] sm:$0xff]
    %v927 = vld [vmem:[%s424 + $0x38] sm:$0xff]
    %v928 = vld [vmem:[%s424 + $0x40] sm:$0xff]
    %v929 = vld [vmem:[%s424 + $0x48] sm:$0xff]
    %v930 = vld [vmem:[%s424 + $0x50] sm:$0xff]
    %v931 = vld [vmem:[%s424 + $0x58] sm:$0xff]
    %v932 = vld [vmem:[%s424 + $0x60] sm:$0xff]
    %v933 = vld [vmem:[%s424 + $0x68] sm:$0xff]
    %v934 = vld [vmem:[%s424 + $0x70] sm:$0xff]
    %v935 = vld [vmem:[%s424 + $0x78] sm:$0xff]
    %v936 = vld [vmem:[%s441] sm:$0xff]
    %v937 = vld [vmem:[%s441 + $0x8] sm:$0xff]
    %v938 = vld [vmem:[%s441 + $0x10] sm:$0xff]
    %v939 = vld [vmem:[%s441 + $0x18] sm:$0xff]
    %v940 = vld [vmem:[%s441 + $0x20] sm:$0xff]
    %v941 = vld [vmem:[%s441 + $0x28] sm:$0xff]
    %v942 = vld [vmem:[%s441 + $0x30] sm:$0xff]
    %v943 = vld [vmem:[%s441 + $0x38] sm:$0xff]
    %v944 = vld [vmem:[%s441 + $0x40] sm:$0xff]
    %v945 = vld [vmem:[%s441 + $0x48] sm:$0xff]
    %v946 = vld [vmem:[%s441 + $0x50] sm:$0xff]
    %v947 = vld [vmem:[%s441 + $0x58] sm:$0xff]
    %v948 = vld [vmem:[%s441 + $0x60] sm:$0xff]
    %v949 = vld [vmem:[%s441 + $0x68] sm:$0xff]
    %v950 = vld [vmem:[%s441 + $0x70] sm:$0xff]
    %v951 = vld [vmem:[%s441 + $0x78] sm:$0xff]
    %s952 = scalar_lea.vmem [#allocation10], 640
    %v953 = vld [vmem:[%s952] sm:$0xff]
    %v954 = vld [vmem:[%s952 + $0x8] sm:$0xff]
    %v955 = vld [vmem:[%s952 + $0x10] sm:$0xff]
    %v956 = vld [vmem:[%s952 + $0x18] sm:$0xff]
    %v957 = vld [vmem:[%s952 + $0x20] sm:$0xff]
    %v958 = vld [vmem:[%s952 + $0x28] sm:$0xff]
    %v959 = vld [vmem:[%s952 + $0x30] sm:$0xff]
    %v960 = vld [vmem:[%s952 + $0x38] sm:$0xff]
    %v961 = vld [vmem:[%s952 + $0x40] sm:$0xff]
    %v962 = vld [vmem:[%s952 + $0x48] sm:$0xff]
    %v963 = vld [vmem:[%s952 + $0x50] sm:$0xff]
    %v964 = vld [vmem:[%s952 + $0x58] sm:$0xff]
    %v965 = vld [vmem:[%s952 + $0x60] sm:$0xff]
    %v966 = vld [vmem:[%s952 + $0x68] sm:$0xff]
    %v967 = vld [vmem:[%s952 + $0x70] sm:$0xff]
    %v968 = vld [vmem:[%s952 + $0x78] sm:$0xff]
    %v969 = vmul.f32 %v936, %v953
    %v970 = vmul.f32 %v937, %v954
    %v971 = vmul.f32 %v938, %v955
    %v972 = vmul.f32 %v939, %v956
    %v973 = vmul.f32 %v940, %v957
    %v974 = vmul.f32 %v941, %v958
    %v975 = vmul.f32 %v942, %v959
    %v976 = vmul.f32 %v943, %v960
    %v977 = vmul.f32 %v944, %v961
    %v978 = vmul.f32 %v945, %v962
    %v979 = vmul.f32 %v946, %v963
    %v980 = vmul.f32 %v947, %v964
    %v981 = vmul.f32 %v948, %v965
    %v982 = vmul.f32 %v949, %v966
    %v983 = vmul.f32 %v950, %v967
    %v984 = vmul.f32 %v951, %v968
    %v985 = vadd.f32 %v920, %v969
    %v986 = vadd.f32 %v921, %v970
    %v987 = vadd.f32 %v922, %v971
    %v988 = vadd.f32 %v923, %v972
    %v989 = vadd.f32 %v924, %v973
    %v990 = vadd.f32 %v925, %v974
    %v991 = vadd.f32 %v926, %v975
    %v992 = vadd.f32 %v927, %v976
    %v993 = vadd.f32 %v928, %v977
    %v994 = vadd.f32 %v929, %v978
    %v995 = vadd.f32 %v930, %v979
    %v996 = vadd.f32 %v931, %v980
    %v997 = vadd.f32 %v932, %v981
    %v998 = vadd.f32 %v933, %v982
    %v999 = vadd.f32 %v934, %v983
    %v1000 = vadd.f32 %v935, %v984
    %v1001 = vld [vmem:[%s507] sm:$0x1]
    %v1002 = vld [vmem:[%s509] sm:$0x1]
    %s1003 = scalar_lea.vmem %s6, 5
    %v1004 = vld [vmem:[%s1003] sm:$0x1]
    %v1005 = vmul.f32 %v1002, %v1004
    %v1006 = vadd.f32 %v1001, %v1005
    %v1008 = vlaneseq
    %v1009 = vshrl.u32 %v1008, 7
    %v1010 = vsub.s32 0, %v1009
    %v1011 = vrot.slane %v1006, %v1010
    %1013 = vmatprep.subr.mxu0 0.0
    %1014 = vmatpush1.msra.mxu0 %v1000
    %1015 = vmatprep.subr.mxu0 0.0
    %1016 = vmatpush1.msra.mxu0 %v999
    %1017 = vmatprep.subr.mxu0 0.0
    %1018 = vmatpush1.msra.mxu0 %v998
    %1019 = vmatprep.subr.mxu0 0.0
    %1020 = vmatpush1.msra.mxu0 %v997
    %1021 = vmatprep.subr.mxu0 0.0
    %1022 = vmatpush1.msra.mxu0 %v996
    %1023 = vmatprep.subr.mxu0 0.0
    %1024 = vmatpush1.msra.mxu0 %v995
    %1025 = vmatprep.subr.mxu0 0.0
    %1026 = vmatpush1.msra.mxu0 %v994
    %1027 = vmatprep.subr.mxu0 0.0
    %1028 = vmatpush1.msra.mxu0 %v993
    %1029 = vmatprep.subr.mxu0 0.0
    %1030 = vmatpush1.msra.mxu0 %v992
    %1031 = vmatprep.subr.mxu0 0.0
    %1032 = vmatpush1.msra.mxu0 %v991
    %1033 = vmatprep.subr.mxu0 0.0
    %1034 = vmatpush1.msra.mxu0 %v990
    %1035 = vmatprep.subr.mxu0 0.0
    %1036 = vmatpush1.msra.mxu0 %v989
    %1037 = vmatprep.subr.mxu0 0.0
    %1038 = vmatpush1.msra.mxu0 %v988
    %1039 = vmatprep.subr.mxu0 0.0
    %1040 = vmatpush1.msra.mxu0 %v987
    %1041 = vmatprep.subr.mxu0 0.0
    %1042 = vmatpush1.msra.mxu0 %v986
    %1043 = vmatprep.subr.mxu0 0.0
    %1044 = vmatpush1.msra.mxu0 %v985
    %1045 = vmatprep.subr.mxu0 0.0
    %1046 = vmatpush2.msra.mxu0 0.0
    %1047 = vmatprep.subr.mxu0 0.0
    %1048 = vmatpush2.msra.mxu0 0.0
    %1049 = vmatprep.subr.mxu0 0.0
    %1050 = vmatpush2.msra.mxu0 0.0
    %1051 = vmatprep.subr.mxu0 0.0
    %1052 = vmatpush2.msra.mxu0 0.0
    %1053 = vmatprep.subr.mxu0 0.0
    %1054 = vmatpush2.msra.mxu0 0.0
    %1055 = vmatprep.subr.mxu0 0.0
    %1056 = vmatpush2.msra.mxu0 0.0
    %1057 = vmatprep.subr.mxu0 0.0
    %1058 = vmatpush2.msra.mxu0 0.0
    %1059 = vmatprep.subr.mxu0 0.0
    %1060 = vmatpush2.msra.mxu0 0.0
    %1061 = vmatprep.subr.mxu0 0.0
    %1062 = vmatpush2.msra.mxu0 0.0
    %1063 = vmatprep.subr.mxu0 0.0
    %1064 = vmatpush2.msra.mxu0 0.0
    %1065 = vmatprep.subr.mxu0 0.0
    %1066 = vmatpush2.msra.mxu0 0.0
    %1067 = vmatprep.subr.mxu0 0.0
    %1068 = vmatpush2.msra.mxu0 0.0
    %1069 = vmatprep.subr.mxu0 0.0
    %1070 = vmatpush2.msra.mxu0 0.0
    %1071 = vmatprep.subr.mxu0 0.0
    %1072 = vmatpush2.msra.mxu0 0.0
    %1073 = vmatprep.subr.mxu0 0.0
    %1074 = vmatpush2.msra.mxu0 0.0
    %1075 = vmatprep.subr.mxu0 0.0
    %1076 = vmatpush2.msra.mxu0 0.0
    %1077 = vmatprep.mubr.f32.mxu0 0.0
    %1078 = vmatmul.mubr.f32.gmra.mxu0 %v919
    %v1079 = vpop.f32.mrf.mxu0
    %v1080 = vadd.f32 %v1011, %v1079
    %v1081 = vpop.f32.mrf.mxu0
    %1082 = vdwg.mxu0
    %s1083 = scalar_lea.vmem [#allocation11], 8
    %1084 = vst [vmem:[%s1083] sm:$0xff] %v1080
    // Predicated region
    $region50: #{tpu_custom_call.1} parent=1 // pred_check
      _
    $region51: #{tpu_custom_call.1} parent=1 // pred_check_branch
      %1086 = sbr.rel (0) target = $region53
    $region52: #{tpu_custom_call.1} parent=1 // pred_region
      %s1088 = ssub.s32 256, 256
      %1089 = vsyncadd [#allocation4], %s1088
      %s1090 = sshll.u32 [#allocation11], 4
      %s1091 = int_to_ptr.vmem [resolvable:$true] %s1090
      %1096 = dma.vmem_to_hbm [thread:$0]  %s1091, 256, %s7, [#allocation4], 128, 128, 8
    $region53: #{tpu_custom_call.1} parent=1 // pred_fallthru
      _
    // Predicated region
    $region54: #{tpu_custom_call.1} parent=1 // pred_check
      _
    $region55: #{tpu_custom_call.1} parent=1 // pred_check_branch
      %1098 = sbr.rel (0) target = $region57
    $region56: #{tpu_custom_call.1} parent=1 // pred_region
      %1099 = dma.done [#allocation4], 256
    $region57: #{tpu_custom_call.1} parent=1 // pred_fallthru
      _
    %1100 = vsyncpa [#allocation3], 1
    %1101 = vsyncpa [#allocation6], 1
    %1102 = vsyncpa [#allocation9], 1
    %1103 = vsyncpa [#allocation4], 1

</llo_original>
